<compile_context>
chip_gen: v7x
topology: tpu7x:2x2x1
jax: 0.10.0
libtpu: 0.0.40
codegen_flags: <defaults>
</compile_context>

<pallas_src>
import functools

import jax
import jax.numpy as jnp
from jax.experimental import pallas as pl
from jax.experimental.pallas import tpu as pltpu

_LEAKY_SLOPE = 0.2
_BN_EPS = 1e-5


def _round_up(v, m):
    return ((v + m - 1) // m) * m


@functools.lru_cache(maxsize=1)
def _vmem_config():
    """(tile_budget_bytes, vmem_limit_bytes), generation-aware with a safe fallback."""
    try:
        phys = int(pltpu.get_tpu_info().vmem_capacity_bytes)
    except Exception:
        phys = 64 * 1024 * 1024                      # v7x worst case (per TensorCore)
    limit = max(32 * 1024 * 1024, min(phys - 16 * 1024 * 1024, 96 * 1024 * 1024))
    budget = max(16 * 1024 * 1024, min(limit - 16 * 1024 * 1024, 64 * 1024 * 1024))
    return budget, limit


def _clamp_rows(tm, m_rows):
    if tm >= m_rows:
        return int(m_rows)            # one block covering the full dim (always legal)
    return max(8, (int(tm) // 8) * 8)


def _pick_block_rows(m_rows, k_in, n_cols, budget_bytes, cap=1024):
    """Largest row tile whose double-buffered x/out tiles + resident bf16 W fit."""
    fixed = 2 * k_in * n_cols * 2 + 8 * n_cols * 4 + 512 * 1024
    per_row = 2 * 4 * k_in + 4 * 4 * n_cols          # x (f32, 2 bufs) + y/out (f32)
    avail = budget_bytes - fixed
    tm = 8 if avail <= 0 else min(cap, avail // per_row)
    return _clamp_rows(tm, m_rows)


def _pick_epilogue_rows(m_rows, n_cols, budget_bytes, cap=2048):
    """Pass-2 (memory-bound) tile: independent of the matmul tile, as big as fits."""
    per_row = 4 * 4 * n_cols                         # in + out, double-buffered, f32
    tm = min(cap, max(8, budget_bytes // per_row))
    return _clamp_rows(tm, m_rows)


def _fits_fast_path(m_rows, k_in, n_cols, tm, budget_bytes):
    nt = pl.cdiv(m_rows, tm)
    need = (nt * tm * n_cols * 4        # y kept resident in VMEM scratch
            + 2 * tm * k_in * 4         # x double buffer (f32)
            + 2 * tm * n_cols * 4       # out double buffer (f32)
            + 2 * k_in * n_cols * 2     # bf16 weight double buffer
            + 10 * n_cols * 4           # gamma/beta/sum/sumsq/scale/shift
            + 1024 * 1024)              # slack
    return need <= budget_bytes


# ---------------------------------------------------------------------------
# Kernels
# ---------------------------------------------------------------------------

def _make_fused_bn_kernel(m_true, tm, eps):
    """VMEM-resident fast path.  grid = (2, num_row_tiles):
       phase 0: y = bf16(x) @ bf16(W) (f32 acc), y kept in VMEM, masked moments;
                on the last tile fold BN into (scale, shift).
       phase 1: z = y*scale + shift; LeakyReLU; write output tiles."""
    inv_m = 1.0 / float(m_true)

    def kernel(x_ref, w_ref, gamma_ref, beta_ref, o_ref,
               y_buf, sum_ref, sumsq_ref, scale_ref, shift_ref):
        p = pl.program_id(0)
        i = pl.program_id(1)

        @pl.when((p == 0) & (i == 0))
        def _():
            sum_ref[...] = jnp.zeros_like(sum_ref)
            sumsq_ref[...] = jnp.zeros_like(sumsq_ref)

        @pl.when(p == 0)
        def _():
            # Linear bias is dropped: it cancels exactly under training-mode BN.
            y = jnp.dot(x_ref[...].astype(jnp.bfloat16), w_ref[...],
                        preferred_element_type=jnp.float32)
            y_buf[i] = y
            # Mask rows past the true batch size (last / partial tile).
            rows = jax.lax.broadcasted_iota(jnp.int32, y.shape, 0) + i * tm
            ym = jnp.where(rows < m_true, y, 0.0)
            sum_ref[...] += jnp.sum(ym, axis=0, keepdims=True)
            sumsq_ref[...] += jnp.sum(ym * ym, axis=0, keepdims=True)

        @pl.when((p == 0) & (i == pl.num_programs(1) - 1))
        def _():
            mean = sum_ref[...] * inv_m
            var = jnp.maximum(sumsq_ref[...] * inv_m - mean * mean, 0.0)
            scale = gamma_ref[...] * jax.lax.rsqrt(var + eps)
            scale_ref[...] = scale
            shift_ref[...] = beta_ref[...] - mean * scale

        @pl.when(p == 1)
        def _():
            z = y_buf[i] * scale_ref[...] + shift_ref[...]
            o_ref[...] = jnp.maximum(z, _LEAKY_SLOPE * z)

    return kernel


def _make_matmul_stats_kernel(m_true, tm, eps):
    """Two-pass fallback, pass 1: y to HBM + masked cross-tile moments + folded BN."""
    inv_m = 1.0 / float(m_true)

    def kernel(x_ref, w_ref, gamma_ref, beta_ref,
               y_ref, scale_ref, shift_ref, sum_ref, sumsq_ref):
        i = pl.program_id(0)

        @pl.when(i == 0)
        def _():
            sum_ref[...] = jnp.zeros_like(sum_ref)
            sumsq_ref[...] = jnp.zeros_like(sumsq_ref)

        y = jnp.dot(x_ref[...].astype(jnp.bfloat16), w_ref[...],
                    preferred_element_type=jnp.float32)
        y_ref[...] = y
        rows = jax.lax.broadcasted_iota(jnp.int32, y.shape, 0) + i * tm
        ym = jnp.where(rows < m_true, y, 0.0)
        sum_ref[...] += jnp.sum(ym, axis=0, keepdims=True)
        sumsq_ref[...] += jnp.sum(ym * ym, axis=0, keepdims=True)

        @pl.when(i == pl.num_programs(0) - 1)
        def _():
            mean = sum_ref[...] * inv_m
            var = jnp.maximum(sumsq_ref[...] * inv_m - mean * mean, 0.0)
            scale = gamma_ref[...] * jax.lax.rsqrt(var + eps)
            scale_ref[...] = scale
            shift_ref[...] = beta_ref[...] - mean * scale

    return kernel


def _normalize_kernel(y_ref, scale_ref, shift_ref, o_ref):
    """Two-pass fallback, pass 2: folded BN affine + LeakyReLU(0.2), in place."""
    z = y_ref[...] * scale_ref[...] + shift_ref[...]
    o_ref[...] = jnp.maximum(z, _LEAKY_SLOPE * z)


def _linear_act_kernel(x_ref, w_ref, bias_ref, o_ref):
    """batchnorm=False path: Linear + bias + LeakyReLU(0.2) in one pass."""
    y = jnp.dot(x_ref[...].astype(jnp.bfloat16), w_ref[...],
                preferred_element_type=jnp.float32)
    y = y + bias_ref[...]
    o_ref[...] = jnp.maximum(y, _LEAKY_SLOPE * y)


# ---------------------------------------------------------------------------
# Wrapper
# ---------------------------------------------------------------------------

def prepare_linear_unit_params(weight, bias, gamma, beta):
    """One-time parameter prep: W -> (K, N) bf16, N padded to a multiple of 128
    (lane-dense MXU / unmasked stores).  bias/gamma/beta stay f32."""
    n_out, k_in = weight.shape
    n_cols = max(_round_up(n_out, 128), 128)
    w_t = jnp.asarray(weight, jnp.float32).T.astype(jnp.bfloat16)
    w_pad = jnp.zeros((k_in, n_cols), jnp.bfloat16).at[:, :n_out].set(w_t)
    bias_pad = jnp.zeros((1, n_cols), jnp.float32).at[:, :n_out].set(
        jnp.asarray(bias, jnp.float32).reshape(1, n_out))
    gamma_pad = jnp.ones((1, n_cols), jnp.float32).at[:, :n_out].set(
        jnp.asarray(gamma, jnp.float32).reshape(1, n_out))
    beta_pad = jnp.zeros((1, n_cols), jnp.float32).at[:, :n_out].set(
        jnp.asarray(beta, jnp.float32).reshape(1, n_out))
    return w_pad, bias_pad, gamma_pad, beta_pad


@functools.partial(jax.jit,
                   static_argnames=("out_features", "batchnorm", "block_rows", "fast_path"))
def linear_unit_forward(x, w_pad, bias_pad, gamma_pad, beta_pad, *,
                        out_features, batchnorm=True, block_rows=None, fast_path=None):
    """x: (B, in_features) -> LeakyReLU(BN(Linear(x))) of shape (B, out_features)."""
    x = x.astype(jnp.float32)
    m_rows, k_in = x.shape
    kw_, n_cols = w_pad.shape
    assert kw_ == k_in, (kw_, k_in)

    budget, vmem_limit = _vmem_config()
    if block_rows is None:
        tm = _pick_block_rows(m_rows, k_in, n_cols, budget)
    else:
        tm = _clamp_rows(int(block_rows), m_rows)
    nt = pl.cdiv(m_rows, tm)

    cp_serial = pltpu.CompilerParams(dimension_semantics=("arbitrary",),
                                     vmem_limit_bytes=vmem_limit)
    cp_parallel = pltpu.CompilerParams(dimension_semantics=("parallel",),
                                       vmem_limit_bytes=vmem_limit)
    cp_fused = pltpu.CompilerParams(dimension_semantics=("arbitrary", "arbitrary"),
                                    vmem_limit_bytes=vmem_limit)

    matmul_cost = pl.CostEstimate(
        flops=2 * m_rows * k_in * n_cols, transcendentals=0,
        bytes_accessed=4 * m_rows * k_in + 2 * k_in * n_cols + 4 * m_rows * n_cols)

    vec_spec = pl.BlockSpec((1, n_cols), lambda i: (0, 0))

    if not batchnorm:
        out_pad = pl.pallas_call(
            _linear_act_kernel,
            out_shape=jax.ShapeDtypeStruct((m_rows, n_cols), jnp.float32),
            grid=(nt,),
            in_specs=[pl.BlockSpec((tm, k_in), lambda i: (i, 0)),
                      pl.BlockSpec((k_in, n_cols), lambda i: (0, 0)),
                      vec_spec],
            out_specs=pl.BlockSpec((tm, n_cols), lambda i: (i, 0)),
            compiler_params=cp_parallel,
            cost_estimate=matmul_cost,
        )(x, w_pad, bias_pad)
        return out_pad[:, :out_features]

    use_fast = fast_path if fast_path is not None else _fits_fast_path(
        m_rows, k_in, n_cols, tm, budget)

    if use_fast:
        # ---- single call, y never leaves VMEM --------------------------------
        last = nt - 1
        out_pad = pl.pallas_call(
            _make_fused_bn_kernel(m_rows, tm, _BN_EPS),
            out_shape=jax.ShapeDtypeStruct((m_rows, n_cols), jnp.float32),
            grid=(2, nt),
            in_specs=[
                # phase 0 walks the row tiles; phase 1 pins x to the last tile
                # (already resident) so no further x DMA is issued.
                pl.BlockSpec((tm, k_in), lambda p, i: ((1 - p) * i + p * last, 0)),
                pl.BlockSpec((k_in, n_cols), lambda p, i: (0, 0)),
                pl.BlockSpec((1, n_cols), lambda p, i: (0, 0)),
                pl.BlockSpec((1, n_cols), lambda p, i: (0, 0)),
            ],
            # phase 0 parks the (unwritten) output on block 0; phase 1 walks the
            # blocks and overwrites them, so only final data reaches HBM.
            out_specs=pl.BlockSpec((tm, n_cols), lambda p, i: (p * i, 0)),
            scratch_shapes=[
                pltpu.VMEM((nt, tm, n_cols), jnp.float32),   # resident y
                pltpu.VMEM((1, n_cols), jnp.float32),        # running column sum
                pltpu.VMEM((1, n_cols), jnp.float32),        # running column sum sq
                pltpu.VMEM((1, n_cols), jnp.float32),        # folded scale
                pltpu.VMEM((1, n_cols), jnp.float32),        # folded shift
            ],
            compiler_params=cp_fused,
            cost_estimate=matmul_cost,
        )(x, w_pad, gamma_pad, beta_pad)
        return out_pad[:, :out_features]

    # ---- large-activation fallback: two passes (y through HBM) ---------------
    y_pad, scale, shift = pl.pallas_call(
        _make_matmul_stats_kernel(m_rows, tm, _BN_EPS),
        out_shape=(jax.ShapeDtypeStruct((m_rows, n_cols), jnp.float32),
                   jax.ShapeDtypeStruct((1, n_cols), jnp.float32),
                   jax.ShapeDtypeStruct((1, n_cols), jnp.float32)),
        grid=(nt,),
        in_specs=[pl.BlockSpec((tm, k_in), lambda i: (i, 0)),
                  pl.BlockSpec((k_in, n_cols), lambda i: (0, 0)),
                  vec_spec, vec_spec],
        out_specs=(pl.BlockSpec((tm, n_cols), lambda i: (i, 0)),
                   vec_spec, vec_spec),
        scratch_shapes=[pltpu.VMEM((1, n_cols), jnp.float32),
                        pltpu.VMEM((1, n_cols), jnp.float32)],
        compiler_params=cp_serial,               # stats carried across row tiles
        cost_estimate=matmul_cost,
    )(x, w_pad, gamma_pad, beta_pad)

    tm2 = _pick_epilogue_rows(m_rows, n_cols, budget)   # decoupled, bigger tiles
    nt2 = pl.cdiv(m_rows, tm2)
    out_pad = pl.pallas_call(
        _normalize_kernel,
        out_shape=jax.ShapeDtypeStruct((m_rows, n_cols), jnp.float32),
        grid=(nt2,),
        in_specs=[pl.BlockSpec((tm2, n_cols), lambda i: (i, 0)),
                  vec_spec, vec_spec],
        out_specs=pl.BlockSpec((tm2, n_cols), lambda i: (i, 0)),
        input_output_aliases={0: 0},             # normalize y in place
        compiler_params=cp_parallel,             # independent tiles -> megacore
        cost_estimate=pl.CostEstimate(flops=2 * m_rows * n_cols, transcendentals=0,
                                      bytes_accessed=8 * m_rows * n_cols),
    )(y_pad, scale, shift)
    return out_pad[:, :out_features]


# ---------------------------------------------------------------------------
# Reference + test
# ---------------------------------------------------------------------------

def _reference(x, weight, bias, gamma, beta, batchnorm=True, mxu_dtype=jnp.float32):
    """Pure-JAX mirror of the PyTorch forward (training-mode BatchNorm1d).
    mxu_dtype=bfloat16 mirrors the kernel's MXU input precision."""
    y = jnp.dot(x.astype(mxu_dtype), weight.T.astype(mxu_dtype),
                preferred_element_type=jnp.float32) + bias.astype(jnp.float32)
    if batchnorm:
        mean = jnp.mean(y, axis=0)
        var = jnp.mean((y - mean) ** 2, axis=0)          # biased (training mode)
        y = (y - mean) / jnp.sqrt(var + _BN_EPS) * gamma + beta
    return jnp.maximum(y, _LEAKY_SLOPE * y)


def _check(name, out, x, weight, bias, gamma, beta, batchnorm):
    ref_bf16 = _reference(x, weight, bias, gamma, beta, batchnorm, jnp.bfloat16)
    ref_f32 = _reference(x, weight, bias, gamma, beta, batchnorm, jnp.float32)
    assert out.shape == ref_f32.shape, (name, out.shape, ref_f32.shape)
    assert bool(jnp.all(jnp.isfinite(out))), name
    err_tight = float(jnp.max(jnp.abs(out - ref_bf16)))   # same MXU input precision
    err_loose = float(jnp.max(jnp.abs(out - ref_f32)))    # vs exact f32 reference
    assert err_tight < 2e-3, (name, err_tight)
    assert err_loose < 6e-2, (name, err_loose)


if __name__ == "__main__":
    # B deliberately not a multiple of the row tile; K, N < 128: exercises the
    # masked partial tile, the lane padding and all kernel paths.
    B, IN_F, OUT_F = 300, 32, 32

    key = jax.random.PRNGKey(0)
    kx, kw, kb, kg, kbt = jax.random.split(key, 5)

    x = jax.random.normal(kx, (B, IN_F), dtype=jnp.float32)
    bound = 1.0 / (IN_F ** 0.5)                  # PyTorch nn.Linear default init
    weight = jax.random.uniform(kw, (OUT_F, IN_F), minval=-bound, maxval=bound,
                                dtype=jnp.float32)
    bias = jax.random.uniform(kb, (OUT_F,), minval=-bound, maxval=bound,
                              dtype=jnp.float32)
    gamma = jax.random.uniform(kg, (OUT_F,), minval=0.5, maxval=1.5, dtype=jnp.float32)
    beta = jax.random.uniform(kbt, (OUT_F,), minval=-0.5, maxval=0.5, dtype=jnp.float32)

    params = prepare_linear_unit_params(weight, bias, gamma, beta)

    # 1) batchnorm=True, auto tiling -> VMEM-resident fast path.
    out = jax.block_until_ready(
        linear_unit_forward(x, *params, out_features=OUT_F, batchnorm=True))
    assert out.shape == (B, OUT_F)
    _check("bn_fast_auto", out, x, weight, bias, gamma, beta, True)

    # 2) batchnorm=True, forced small tiles on the fast path: exercises the
    #    two-phase grid and the masked cross-tile moment accumulation.
    out2 = jax.block_until_ready(
        linear_unit_forward(x, *params, out_features=OUT_F, batchnorm=True,
                            block_rows=64, fast_path=True))
    _check("bn_fast_tiled", out2, x, weight, bias, gamma, beta, True)

    # 3) batchnorm=True, forced two-pass (HBM y) path with decoupled epilogue tiles.
    out3 = jax.block_until_ready(
        linear_unit_forward(x, *params, out_features=OUT_F, batchnorm=True,
                            block_rows=128, fast_path=False))
    _check("bn_two_pass", out3, x, weight, bias, gamma, beta, True)

    # 4) batchnorm=False path (Linear + bias + LeakyReLU only), auto tiling.
    out4 = jax.block_until_ready(
        linear_unit_forward(x, *params, out_features=OUT_F, batchnorm=False))
    _check("no_bn", out4, x, weight, bias, gamma, beta, False)

    print("KERNEL_OK")
</pallas_src>

<mosaic_0001>
module attributes {stable_mosaic.version = 11 : i64} {
  func.func @kernel(%arg0: i32, %arg1: i32, %arg2: memref<300x32xf32, #tpu.memory_space<vmem>>, %arg3: memref<32x128xbf16, #tpu.memory_space<vmem>>, %arg4: memref<1x128xf32, #tpu.memory_space<vmem>>, %arg5: memref<1x128xf32, #tpu.memory_space<vmem>>, %arg6: memref<300x128xf32, #tpu.memory_space<vmem>>, %arg7: memref<1x300x128xf32, #tpu.memory_space<vmem>>, %arg8: memref<1x128xf32, #tpu.memory_space<vmem>>, %arg9: memref<1x128xf32, #tpu.memory_space<vmem>>, %arg10: memref<1x128xf32, #tpu.memory_space<vmem>>, %arg11: memref<1x128xf32, #tpu.memory_space<vmem>>) attributes {dimension_semantics = [#tpu.dimension_semantics<arbitrary>, #tpu.dimension_semantics<arbitrary>], iteration_bounds = array<i64: 2, 1>, scalar_prefetch = 0 : i64, scratch_operands = 5 : i64, tpu.core_type = #tpu.core_type<tc>, window_params = [{transform_indices = @transform_0, window_bounds = array<i64: 300, 32>}, {pipeline_mode = #tpu.pipeline_mode<synchronous>, transform_indices = @transform_1, window_bounds = array<i64: 32, 128>}, {pipeline_mode = #tpu.pipeline_mode<synchronous>, transform_indices = @transform_2, window_bounds = array<i64: 1, 128>}, {pipeline_mode = #tpu.pipeline_mode<synchronous>, transform_indices = @transform_3, window_bounds = array<i64: 1, 128>}, {transform_indices = @transform_4, window_bounds = array<i64: 300, 128>}]} {
    %c0_i32 = arith.constant 0 : i32
    %0 = arith.cmpi eq, %arg0, %c0_i32 : i32
    %c0_i32_0 = arith.constant 0 : i32
    %1 = arith.cmpi eq, %arg1, %c0_i32_0 : i32
    %2 = arith.andi %0, %1 : i1
    %3 = arith.extui %2 : i1 to i32
    %c0_i32_1 = arith.constant 0 : i32
    %4 = arith.cmpi ne, %3, %c0_i32_1 : i32
    scf.if %4 {
      %cst = arith.constant 0.000000e+00 : f32
      %16 = vector.broadcast %cst : f32 to vector<1x128xf32>
      %c0 = arith.constant 0 : index
      %c0_8 = arith.constant 0 : index
      %17 = vector.load %arg8[%c0, %c0_8] : memref<1x128xf32, #tpu.memory_space<vmem>>, vector<1x128xf32>
      tpu.vector_store %arg8[%c0, %c0_8], %16 {strides = array<i32>} : memref<1x128xf32, #tpu.memory_space<vmem>>, vector<1x128xf32>,
      %cst_9 = arith.constant 0.000000e+00 : f32
      %18 = vector.broadcast %cst_9 : f32 to vector<1x128xf32>
      %c0_10 = arith.constant 0 : index
      %c0_11 = arith.constant 0 : index
      %19 = vector.load %arg9[%c0_10, %c0_11] : memref<1x128xf32, #tpu.memory_space<vmem>>, vector<1x128xf32>
      tpu.vector_store %arg9[%c0_10, %c0_11], %18 {strides = array<i32>} : memref<1x128xf32, #tpu.memory_space<vmem>>, vector<1x128xf32>,
    } else {
    }
    %c0_i32_2 = arith.constant 0 : i32
    %5 = arith.cmpi eq, %arg0, %c0_i32_2 : i32
    %6 = arith.extui %5 : i1 to i32
    %c0_i32_3 = arith.constant 0 : i32
    %7 = arith.cmpi ne, %6, %c0_i32_3 : i32
    scf.if %7 {
      %c0 = arith.constant 0 : index
      %c0_8 = arith.constant 0 : index
      %16 = vector.load %arg2[%c0, %c0_8] : memref<300x32xf32, #tpu.memory_space<vmem>>, vector<300x32xf32>
      %17 = arith.truncf %16 : vector<300x32xf32> to vector<300x32xbf16>
      %c0_9 = arith.constant 0 : index
      %c0_10 = arith.constant 0 : index
      %18 = vector.load %arg3[%c0_9, %c0_10] : memref<32x128xbf16, #tpu.memory_space<vmem>>, vector<32x128xbf16>
      %cst = arith.constant dense<0.000000e+00> : vector<300x128xf32>
      %19 = tpu.matmul %17, %18, %cst {dimension_numbers = #tpu.dot_dimension_numbers<[1], [0], [0], [1], [0, 0, 1, 1], [], []>} : vector<300x32xbf16>, vector<32x128xbf16>, vector<300x128xf32> -> vector<300x128xf32>
      %20 = arith.index_cast %arg1 : i32 to index
      %c0_11 = arith.constant 0 : index
      %c0_12 = arith.constant 0 : index
      %21 = vector.load %arg7[%20, %c0_11, %c0_12] : memref<1x300x128xf32, #tpu.memory_space<vmem>>, vector<1x300x128xf32>
      %22 = vector.shape_cast %21 : vector<1x300x128xf32> to vector<300x128xf32>
      %23 = vector.shape_cast %19 : vector<300x128xf32> to vector<1x300x128xf32>
      tpu.vector_store %arg7[%20, %c0_11, %c0_12], %23 {strides = array<i32>} : memref<1x300x128xf32, #tpu.memory_space<vmem>>, vector<1x300x128xf32>,
      %24 = tpu.iota {dimensions = array<i32: 0>} : vector<300x128xi32>
      %c300_i32 = arith.constant 300 : i32
      %25 = arith.muli %arg1, %c300_i32 : i32
      %26 = vector.broadcast %25 : i32 to vector<300x128xi32>
      %27 = arith.addi %24, %26 : vector<300x128xi32>
      %c300_i32_13 = arith.constant 300 : i32
      %28 = vector.broadcast %c300_i32_13 : i32 to vector<300x128xi32>
      %29 = arith.cmpi slt, %27, %28 : vector<300x128xi32>
      %cst_14 = arith.constant 0.000000e+00 : f32
      %30 = vector.broadcast %cst_14 : f32 to vector<300x128xf32>
      %31 = arith.select %29, %19, %30 : vector<300x128xi1>, vector<300x128xf32>
      %c0_15 = arith.constant 0 : index
      %c0_16 = arith.constant 0 : index
      %32 = vector.load %arg8[%c0_15, %c0_16] : memref<1x128xf32, #tpu.memory_space<vmem>>, vector<1x128xf32>
      %cst_17 = arith.constant dense<0.000000e+00> : vector<128xf32>
      %33 = vector.multi_reduction <add>, %31, %cst_17 [0] : vector<300x128xf32> to vector<128xf32>
      %34 = vector.shape_cast %33 : vector<128xf32> to vector<1x128xf32>
      %35 = arith.addf %32, %34 : vector<1x128xf32>
      %c0_18 = arith.constant 0 : index
      %c0_19 = arith.constant 0 : index
      %36 = vector.load %arg8[%c0_18, %c0_19] : memref<1x128xf32, #tpu.memory_space<vmem>>, vector<1x128xf32>
      tpu.vector_store %arg8[%c0_18, %c0_19], %35 {strides = array<i32>} : memref<1x128xf32, #tpu.memory_space<vmem>>, vector<1x128xf32>,
      %c0_20 = arith.constant 0 : index
      %c0_21 = arith.constant 0 : index
      %37 = vector.load %arg9[%c0_20, %c0_21] : memref<1x128xf32, #tpu.memory_space<vmem>>, vector<1x128xf32>
      %38 = arith.mulf %31, %31 : vector<300x128xf32>
      %cst_22 = arith.constant dense<0.000000e+00> : vector<128xf32>
      %39 = vector.multi_reduction <add>, %38, %cst_22 [0] : vector<300x128xf32> to vector<128xf32>
      %40 = vector.shape_cast %39 : vector<128xf32> to vector<1x128xf32>
      %41 = arith.addf %37, %40 : vector<1x128xf32>
      %c0_23 = arith.constant 0 : index
      %c0_24 = arith.constant 0 : index
      %42 = vector.load %arg9[%c0_23, %c0_24] : memref<1x128xf32, #tpu.memory_space<vmem>>, vector<1x128xf32>
      tpu.vector_store %arg9[%c0_23, %c0_24], %41 {strides = array<i32>} : memref<1x128xf32, #tpu.memory_space<vmem>>, vector<1x128xf32>,
    } else {
    }
    %c0_i32_4 = arith.constant 0 : i32
    %8 = arith.cmpi eq, %arg0, %c0_i32_4 : i32
    %c0_i32_5 = arith.constant 0 : i32
    %9 = arith.cmpi eq, %arg1, %c0_i32_5 : i32
    %10 = arith.andi %8, %9 : i1
    %11 = arith.extui %10 : i1 to i32
    %c0_i32_6 = arith.constant 0 : i32
    %12 = arith.cmpi ne, %11, %c0_i32_6 : i32
    scf.if %12 {
      %c0 = arith.constant 0 : index
      %c0_8 = arith.constant 0 : index
      %16 = vector.load %arg8[%c0, %c0_8] : memref<1x128xf32, #tpu.memory_space<vmem>>, vector<1x128xf32>
      %cst = arith.constant 0.00333333341 : f32
      %17 = vector.broadcast %cst : f32 to vector<1x128xf32>
      %18 = arith.mulf %16, %17 : vector<1x128xf32>
      %c0_9 = arith.constant 0 : index
      %c0_10 = arith.constant 0 : index
      %19 = vector.load %arg9[%c0_9, %c0_10] : memref<1x128xf32, #tpu.memory_space<vmem>>, vector<1x128xf32>
      %cst_11 = arith.constant 0.00333333341 : f32
      %20 = vector.broadcast %cst_11 : f32 to vector<1x128xf32>
      %21 = arith.mulf %19, %20 : vector<1x128xf32>
      %22 = arith.mulf %18, %18 : vector<1x128xf32>
      %23 = arith.subf %21, %22 : vector<1x128xf32>
      %cst_12 = arith.constant 0.000000e+00 : f32
      %24 = vector.broadcast %cst_12 : f32 to vector<1x128xf32>
      %25 = arith.maximumf %23, %24 : vector<1x128xf32>
      %c0_13 = arith.constant 0 : index
      %c0_14 = arith.constant 0 : index
      %26 = vector.load %arg4[%c0_13, %c0_14] : memref<1x128xf32, #tpu.memory_space<vmem>>, vector<1x128xf32>
      %cst_15 = arith.constant 9.99999974E-6 : f32
      %27 = vector.broadcast %cst_15 : f32 to vector<1x128xf32>
      %28 = arith.addf %25, %27 : vector<1x128xf32>
      %29 = math.rsqrt %28 : vector<1x128xf32>
      %30 = arith.mulf %26, %29 : vector<1x128xf32>
      %c0_16 = arith.constant 0 : index
      %c0_17 = arith.constant 0 : index
      %31 = vector.load %arg10[%c0_16, %c0_17] : memref<1x128xf32, #tpu.memory_space<vmem>>, vector<1x128xf32>
      tpu.vector_store %arg10[%c0_16, %c0_17], %30 {strides = array<i32>} : memref<1x128xf32, #tpu.memory_space<vmem>>, vector<1x128xf32>,
      %c0_18 = arith.constant 0 : index
      %c0_19 = arith.constant 0 : index
      %32 = vector.load %arg5[%c0_18, %c0_19] : memref<1x128xf32, #tpu.memory_space<vmem>>, vector<1x128xf32>
      %33 = arith.mulf %18, %30 : vector<1x128xf32>
      %34 = arith.subf %32, %33 : vector<1x128xf32>
      %c0_20 = arith.constant 0 : index
      %c0_21 = arith.constant 0 : index
      %35 = vector.load %arg11[%c0_20, %c0_21] : memref<1x128xf32, #tpu.memory_space<vmem>>, vector<1x128xf32>
      tpu.vector_store %arg11[%c0_20, %c0_21], %34 {strides = array<i32>} : memref<1x128xf32, #tpu.memory_space<vmem>>, vector<1x128xf32>,
    } else {
    }
    %c1_i32 = arith.constant 1 : i32
    %13 = arith.cmpi eq, %arg0, %c1_i32 : i32
    %14 = arith.extui %13 : i1 to i32
    %c0_i32_7 = arith.constant 0 : i32
    %15 = arith.cmpi ne, %14, %c0_i32_7 : i32
    scf.if %15 {
      %16 = arith.index_cast %arg1 : i32 to index
      %c0 = arith.constant 0 : index
      %c0_8 = arith.constant 0 : index
      %17 = vector.load %arg7[%16, %c0, %c0_8] : memref<1x300x128xf32, #tpu.memory_space<vmem>>, vector<1x300x128xf32>
      %18 = vector.shape_cast %17 : vector<1x300x128xf32> to vector<300x128xf32>
      %c0_9 = arith.constant 0 : index
      %c0_10 = arith.constant 0 : index
      %19 = vector.load %arg10[%c0_9, %c0_10] : memref<1x128xf32, #tpu.memory_space<vmem>>, vector<1x128xf32>
      %20 = vector.broadcast %19 : vector<1x128xf32> to vector<300x128xf32>
      %21 = arith.mulf %18, %20 : vector<300x128xf32>
      %c0_11 = arith.constant 0 : index
      %c0_12 = arith.constant 0 : index
      %22 = vector.load %arg11[%c0_11, %c0_12] : memref<1x128xf32, #tpu.memory_space<vmem>>, vector<1x128xf32>
      %23 = vector.broadcast %22 : vector<1x128xf32> to vector<300x128xf32>
      %24 = arith.addf %21, %23 : vector<300x128xf32>
      %cst = arith.constant 2.000000e-01 : f32
      %25 = vector.broadcast %cst : f32 to vector<300x128xf32>
      %26 = arith.mulf %25, %24 : vector<300x128xf32>
      %27 = arith.maximumf %24, %26 : vector<300x128xf32>
      %c0_13 = arith.constant 0 : index
      %c0_14 = arith.constant 0 : index
      %28 = vector.load %arg6[%c0_13, %c0_14] : memref<300x128xf32, #tpu.memory_space<vmem>>, vector<300x128xf32>
      tpu.vector_store %arg6[%c0_13, %c0_14], %27 {strides = array<i32>} : memref<300x128xf32, #tpu.memory_space<vmem>>, vector<300x128xf32>,
    } else {
    }
    return
  }
  func.func @transform_0(%arg0: i32, %arg1: i32) -> (i32, i32) {
    %c1_i32 = arith.constant 1 : i32
    %0 = arith.subi %c1_i32, %arg0 : i32
    %1 = arith.muli %0, %arg1 : i32
    %c0_i32 = arith.constant 0 : i32
    %2 = arith.muli %arg0, %c0_i32 : i32
    %3 = arith.addi %1, %2 : i32
    %c0_i32_0 = arith.constant 0 : i32
    %c0_i32_1 = arith.constant 0 : i32
    return %3, %c0_i32_0 : i32, i32
  }
  func.func @transform_1(%arg0: i32, %arg1: i32) -> (i32, i32) {
    %c0_i32 = arith.constant 0 : i32
    %c0_i32_0 = arith.constant 0 : i32
    %c0_i32_1 = arith.constant 0 : i32
    return %c0_i32, %c0_i32_0 : i32, i32
  }
  func.func @transform_2(%arg0: i32, %arg1: i32) -> (i32, i32) {
    %c0_i32 = arith.constant 0 : i32
    %c0_i32_0 = arith.constant 0 : i32
    %c0_i32_1 = arith.constant 0 : i32
    return %c0_i32, %c0_i32_0 : i32, i32
  }
  func.func @transform_3(%arg0: i32, %arg1: i32) -> (i32, i32) {
    %c0_i32 = arith.constant 0 : i32
    %c0_i32_0 = arith.constant 0 : i32
    %c0_i32_1 = arith.constant 0 : i32
    return %c0_i32, %c0_i32_0 : i32, i32
  }
  func.func @transform_4(%arg0: i32, %arg1: i32) -> (i32, i32) {
    %0 = arith.muli %arg0, %arg1 : i32
    %c0_i32 = arith.constant 0 : i32
    %c0_i32_0 = arith.constant 0 : i32
    return %0, %c0_i32 : i32, i32
  }
}

</mosaic_0001>

<llo_original>
// kernel: linear_unit_forward.1
$region0: #{linear_unit_forward.1}
  #allocation0 [shape = 'u32[]', space=smem, size = 0x4, offset = 0x4, fixed_abs, tag = 'smem constant byte address 0x4 - core index']
  #allocation1 [shape = 'u32[144,128]{1,0:T(1,128)}', space=vmem, size = 0x12000, scoped, tag = 'internal scratch']
  #allocation2 [shape = 'f32[1,300,128]{2,1,0:T(8,128)}', space=vmem, size = 0x26000, scoped, tag = 'scratch operand']
  #allocation3 [shape = 'f32[1,128]{1,0:T(1,128)}', space=vmem, size = 0x200, scoped, tag = 'scratch operand']
  #allocation4 [shape = 'f32[1,128]{1,0:T(1,128)}', space=vmem, size = 0x200, scoped, tag = 'scratch operand']
  #allocation5 [shape = 'f32[1,128]{1,0:T(1,128)}', space=vmem, size = 0x200, scoped, tag = 'scratch operand']
  #allocation6 [shape = 'f32[1,128]{1,0:T(1,128)}', space=vmem, size = 0x200, scoped, tag = 'scratch operand']
  %s0 = inlined_call_operand.vmem [shape: f32[300,32], index: 0, kind: input, shape index: {}]
  %s1 = inlined_call_operand.vmem [shape: bf16[32,128], index: 1, kind: input, shape index: {}]
  %s2 = inlined_call_operand.vmem [shape: f32[1,128], index: 2, kind: input, shape index: {}]
  %s3 = inlined_call_operand.vmem [shape: f32[1,128], index: 3, kind: input, shape index: {}]
  %s4 = inlined_call_operand.vmem [shape: f32[300,128], index: 4, kind: output, shape index: {}]
  %s5 = sld [smem:[#allocation0]]
  $region65: #{linear_unit_forward.1} parent=0
    _
  %s7 = ssub.s32 1, %s5
  %s8 = scalar_select 0, %s7, %s5
  loop: start=0, step=1, limit=4
  $region2: #{linear_unit_forward.1} parent=0 // loop_pre_header
    _
  $region3: #{linear_unit_forward.1} parent=0 // loop_header
    %s10 = sphi 0, %s14
    %p11 = scmp.ge.s32.totalorder %s10, 4
    %s17 = sphi 0, %s29
    %s18 = sphi 0, %s25
    %s19 = sphi 0, %s17
    %s20 = sphi 0, %s18
    %s21 = sphi 0, %s19
    %s22 = sphi 0, %s20
    %s36 = sphi 0, %s38
    %s39 = sphi 0, %s36
    %s40 = sphi 0, %s39
    %s56 = sphi 0, %s40
    %s60 = sphi 0, %s60
    %s62 = sphi 0, %s60
    %s63 = sphi 0, %s62
    %s77 = sphi 0, %s63
    %s81 = sphi 0, %s81
    %s83 = sphi 0, %s81
    %s84 = sphi 0, %s83
    %s98 = sphi 0, %s84
    %s102 = sphi 0, %s102
    %s104 = sphi 0, %s102
    %s105 = sphi 0, %s104
    %s119 = sphi 0, %s105
    %s127 = sphi 0, %s129
    %s130 = sphi 0, %s127
    %s131 = sphi 0, %s130
    %s147 = sphi 0, %s131
  $region4: #{linear_unit_forward.1} parent=0 // loop_header_branch
    %13 = sbr.rel (%p11) target = $region8
  $region5: #{linear_unit_forward.1} parent=0 // loop_body
    %s15 = ssub.s32 %s10, 1
    %s16 = ssub.s32 %s10, 2
    %s23 = sadd.s32 1, %s18
    %p24 = scmp.ge.s32.totalorder %s23, 1
    %s25 = scalar_select %p24, 0, %s23
    %s26 = sadd.s32 1, %s17
    %s27 = scalar_select %p24, %s26, %s17
    %p28 = scmp.ge.s32.totalorder %s27, 2
    %s29 = scalar_select %p28, 0, %s27
    %s30 = ssub.s32 1, %s17
    %s31 = smul.u32 %s30, %s18
    %s32 = ssub.s32 1, %s29
    %s33 = smul.u32 %s32, %s25
    %s34 = ssub.s32 %s31, %s33
    %p35 = scmp.eq.s32.totalorder %s34, 0
    %s37 = sadd.s32 %s36, 1
    %s38 = scalar_select %p35, %s36, %s37
    %p41 = pneg %p35
    %p42 = scmp.eq.s32.totalorder %s10, 1
    %p43 = por %p41, %p42
    %p44 = scmp.ne.s32.totalorder %s36, %s39
    %p45 = scmp.eq.s32.totalorder %s10, 0
    %p46 = por %p44, %p45
    %p47 = scmp.ne.s32.totalorder %s36, %s39
    %p48 = scmp.eq.s32.totalorder %s15, 1
    %p49 = por %p47, %p48
    %p50 = scmp.ne.s32.totalorder %s39, %s40
    %p51 = scmp.eq.s32.totalorder %s15, 0
    %p52 = por %p50, %p51
    %p53 = scmp.ne.s32.totalorder %s39, %s40
    %p54 = scmp.eq.s32.totalorder %s16, 1
    %p55 = por %p53, %p54
    %p57 = scmp.ne.s32.totalorder %s40, %s56
    %p58 = scmp.eq.s32.totalorder %s16, 0
    %p59 = por %p57, %p58
    %s61 = sadd.s32 %s60, 1
    %p64 = scmp.eq.s32.totalorder %s10, 1
    %p65 = scmp.ne.s32.totalorder %s60, %s62
    %p66 = scmp.eq.s32.totalorder %s10, 0
    %p67 = por %p65, %p66
    %p68 = scmp.ne.s32.totalorder %s60, %s62
    %p69 = scmp.eq.s32.totalorder %s15, 1
    %p70 = por %p68, %p69
    %p71 = scmp.ne.s32.totalorder %s62, %s63
    %p72 = scmp.eq.s32.totalorder %s15, 0
    %p73 = por %p71, %p72
    %p74 = scmp.ne.s32.totalorder %s62, %s63
    %p75 = scmp.eq.s32.totalorder %s16, 1
    %p76 = por %p74, %p75
    %p78 = scmp.ne.s32.totalorder %s63, %s77
    %p79 = scmp.eq.s32.totalorder %s16, 0
    %p80 = por %p78, %p79
    %s82 = sadd.s32 %s81, 1
    %p85 = scmp.eq.s32.totalorder %s10, 1
    %p86 = scmp.ne.s32.totalorder %s81, %s83
    %p87 = scmp.eq.s32.totalorder %s10, 0
    %p88 = por %p86, %p87
    %p89 = scmp.ne.s32.totalorder %s81, %s83
    %p90 = scmp.eq.s32.totalorder %s15, 1
    %p91 = por %p89, %p90
    %p92 = scmp.ne.s32.totalorder %s83, %s84
    %p93 = scmp.eq.s32.totalorder %s15, 0
    %p94 = por %p92, %p93
    %p95 = scmp.ne.s32.totalorder %s83, %s84
    %p96 = scmp.eq.s32.totalorder %s16, 1
    %p97 = por %p95, %p96
    %p99 = scmp.ne.s32.totalorder %s84, %s98
    %p100 = scmp.eq.s32.totalorder %s16, 0
    %p101 = por %p99, %p100
    %s103 = sadd.s32 %s102, 1
    %p106 = scmp.eq.s32.totalorder %s10, 1
    %p107 = scmp.ne.s32.totalorder %s102, %s104
    %p108 = scmp.eq.s32.totalorder %s10, 0
    %p109 = por %p107, %p108
    %p110 = scmp.ne.s32.totalorder %s102, %s104
    %p111 = scmp.eq.s32.totalorder %s15, 1
    %p112 = por %p110, %p111
    %p113 = scmp.ne.s32.totalorder %s104, %s105
    %p114 = scmp.eq.s32.totalorder %s15, 0
    %p115 = por %p113, %p114
    %p116 = scmp.ne.s32.totalorder %s104, %s105
    %p117 = scmp.eq.s32.totalorder %s16, 1
    %p118 = por %p116, %p117
    %p120 = scmp.ne.s32.totalorder %s105, %s119
    %p121 = scmp.eq.s32.totalorder %s16, 0
    %p122 = por %p120, %p121
    %s123 = smul.u32 %s17, %s18
    %s124 = smul.u32 %s29, %s25
    %s125 = ssub.s32 %s123, %s124
    %p126 = scmp.eq.s32.totalorder %s125, 0
    %s128 = sadd.s32 %s127, 1
    %s129 = scalar_select %p126, %s127, %s128
    %p132 = pneg %p126
    %p133 = scmp.eq.s32.totalorder %s10, 1
    %p134 = por %p132, %p133
    %p135 = scmp.ne.s32.totalorder %s127, %s130
    %p136 = scmp.eq.s32.totalorder %s10, 0
    %p137 = por %p135, %p136
    %p138 = scmp.ne.s32.totalorder %s127, %s130
    %p139 = scmp.eq.s32.totalorder %s15, 1
    %p140 = por %p138, %p139
    %p141 = scmp.ne.s32.totalorder %s130, %s131
    %p142 = scmp.eq.s32.totalorder %s15, 0
    %p143 = por %p141, %p142
    %p144 = scmp.ne.s32.totalorder %s130, %s131
    %p145 = scmp.eq.s32.totalorder %s16, 1
    %p146 = por %p144, %p145
    %p148 = scmp.ne.s32.totalorder %s131, %s147
    %p149 = scmp.eq.s32.totalorder %s16, 0
    %p150 = por %p148, %p149
    %p151 = scmp.le.s32.totalorder 1, %s10
    %p152 = scmp.lt.s32.totalorder %s10, 3
    %p153 = pnand %p151, %p152
    %p154 = pneg %p153
    // Predicated region
    $region9: #{linear_unit_forward.1} parent=5 // pred_check
      _
    $region10: #{linear_unit_forward.1} parent=5 // pred_check_branch
      %156 = sbr.rel (%p153) target = $region12
    $region11: #{linear_unit_forward.1} parent=5 // pred_region
      %s157 = ssub.s32 %s10, 1
      // Predicated region
      $region13: #{linear_unit_forward.1} parent=11 // pred_check
        %p158 = pneg %p73
      $region14: #{linear_unit_forward.1} parent=11 // pred_check_branch
        %160 = sbr.rel (%p158) target = $region16
      $region15: #{linear_unit_forward.1} parent=11 // pred_region
        _
      $region16: #{linear_unit_forward.1} parent=11 // pred_fallthru
        _
      // Predicated region
      $region17: #{linear_unit_forward.1} parent=11 // pred_check
        %p161 = pneg %p94
      $region18: #{linear_unit_forward.1} parent=11 // pred_check_branch
        %163 = sbr.rel (%p161) target = $region20
      $region19: #{linear_unit_forward.1} parent=11 // pred_region
        _
      $region20: #{linear_unit_forward.1} parent=11 // pred_fallthru
        _
      // Predicated region
      $region21: #{linear_unit_forward.1} parent=11 // pred_check
        %p164 = pneg %p115
      $region22: #{linear_unit_forward.1} parent=11 // pred_check_branch
        %166 = sbr.rel (%p164) target = $region24
      $region23: #{linear_unit_forward.1} parent=11 // pred_region
        _
      $region24: #{linear_unit_forward.1} parent=11 // pred_fallthru
        _
    $region12: #{linear_unit_forward.1} parent=5 // pred_fallthru
      _
    %p167 = scmp.lt.s32.totalorder %s10, 2
    // Predicated region
    $region25: #{linear_unit_forward.1} parent=5 // pred_check
      %p168 = pneg %p167
    $region26: #{linear_unit_forward.1} parent=5 // pred_check_branch
      %170 = sbr.rel (%p168) target = $region28
    $region27: #{linear_unit_forward.1} parent=5 // pred_region
      // Predicated region
      $region29: #{linear_unit_forward.1} parent=27 // pred_check
        %p171 = pneg %p46
      $region30: #{linear_unit_forward.1} parent=27 // pred_check_branch
        %173 = sbr.rel (%p171) target = $region32
      $region31: #{linear_unit_forward.1} parent=27 // pred_region
        %s174 = ssub.s32 1, %s17
        %s175 = smul.u32 %s174, %s18
        %s176 = smul.u32 38, %s175
        %p177 = scmp.lt.s32.totalorder %s176, 37
        %s178 = scalar_select %p177, %s176, 37
        %s179 = smul.addr %s178, 8
        %s180 = scalar_lea.vmem %s0, %s179
        %s181 = ssub.s32 1, %s17
        %s182 = smul.u32 %s181, %s18
        %s183 = smul.u32 38, %s182
      $region32: #{linear_unit_forward.1} parent=27 // pred_fallthru
        _
    $region28: #{linear_unit_forward.1} parent=5 // pred_fallthru
      _
    %p184 = scmp.le.s32.totalorder 1, %s10
    %p185 = scmp.lt.s32.totalorder %s10, 3
    %p186 = pnand %p184, %p185
    %p187 = pneg %p186
    // Predicated region
    $region33: #{linear_unit_forward.1} parent=5 // pred_check
      _
    $region34: #{linear_unit_forward.1} parent=5 // pred_check_branch
      %189 = sbr.rel (%p186) target = $region36
    $region35: #{linear_unit_forward.1} parent=5 // pred_region
      %s190 = ssub.s32 %s10, 1
      %s191 = ssub.s32 1, %s19
      %s192 = smul.u32 %s191, %s20
      %s193 = smul.u32 38, %s192
      %p194 = scmp.lt.s32.totalorder %s193, 37
      %s195 = scalar_select %p194, %s193, 37
      %s196 = smul.addr %s195, 8
      %s197 = scalar_lea.vmem %s0, %s196
      %p198 = pneg %p52
      %p199 = pneg %p49
      %p200 = pneg %p73
      %p201 = pneg %p70
      %p202 = pneg %p94
      %p203 = pneg %p91
      %p204 = pneg %p115
      %p205 = pneg %p112
      %p206 = pneg %p143
      %p207 = pneg %p140
      %s208 = smul.u32 %s19, %s20
      %s209 = smul.u32 38, %s208
      %p210 = scmp.lt.s32.totalorder %s209, 37
      %s211 = scalar_select %p210, %s209, 37
      %s212 = smul.addr %s211, 8
      %s213 = scalar_lea.vmem %s4, %s212
      %s214 = ssub.s32 1, %s19
      %s215 = smul.u32 %s214, %s20
      %s216 = smul.u32 38, %s215
      %p217 = scmp.lt.s32.totalorder %s216, 37
      %s218 = scalar_select %p217, %s216, 37
      %s219 = smul.addr %s218, 8
      %s220 = scalar_lea.vmem %s0, %s219
      %s221 = ssub.s32 1, %s19
      %s222 = smul.u32 %s221, %s20
      %s223 = smul.u32 38, %s222
      %s224 = smul.u32 %s19, %s20
      %s225 = smul.u32 38, %s224
      %p226 = scmp.lt.s32.totalorder %s225, 37
      %s227 = scalar_select %p226, %s225, 37
      %s228 = smul.addr %s227, 8
      %s229 = scalar_lea.vmem %s4, %s228
      %s230 = smul.u32 %s19, %s20
      %s231 = smul.u32 38, %s230
      %p233 = scmp.eq.s32.totalorder %s19, 0
      %p234 = scmp.eq.s32.totalorder %s20, 0
      %p235 = pnand %p233, %p234
      %p236 = pneg %p235
      // Predicated region
      $region37: #{linear_unit_forward.1} parent=35 // pred_check
        _
      $region38: #{linear_unit_forward.1} parent=35 // pred_check_branch
        %238 = sbr.rel (%p235) target = $region40
      $region39: #{linear_unit_forward.1} parent=35 // pred_region
        %239 = vst [vmem:[#allocation3] sm:$0x1] 0.0
        %240 = vst [vmem:[#allocation4] sm:$0x1] 0.0
      $region40: #{linear_unit_forward.1} parent=35 // pred_fallthru
        _
      // Predicated region
      $region41: #{linear_unit_forward.1} parent=35 // pred_check
        %p241 = pneg %p233
      $region42: #{linear_unit_forward.1} parent=35 // pred_check_branch
        %243 = sbr.rel (%p241) target = $region44
      $region43: #{linear_unit_forward.1} parent=35 // pred_region
        %v244 = vld [vmem:[%s220] sm:$0xff]
        %v245 = vld [vmem:[%s220 + $0x8] sm:$0xff]
        %v246 = vld [vmem:[%s220 + $0x10] sm:$0xff]
        %v247 = vld [vmem:[%s220 + $0x18] sm:$0xff]
        %v248 = vld [vmem:[%s220 + $0x20] sm:$0xff]
        %v249 = vld [vmem:[%s220 + $0x28] sm:$0xff]
        %v250 = vld [vmem:[%s220 + $0x30] sm:$0xff]
        %v251 = vld [vmem:[%s220 + $0x38] sm:$0xff]
        %v252 = vld [vmem:[%s220 + $0x40] sm:$0xff]
        %v253 = vld [vmem:[%s220 + $0x48] sm:$0xff]
        %v254 = vld [vmem:[%s220 + $0x50] sm:$0xff]
        %v255 = vld [vmem:[%s220 + $0x58] sm:$0xff]
        %v256 = vld [vmem:[%s220 + $0x60] sm:$0xff]
        %v257 = vld [vmem:[%s220 + $0x68] sm:$0xff]
        %v258 = vld [vmem:[%s220 + $0x70] sm:$0xff]
        %v259 = vld [vmem:[%s220 + $0x78] sm:$0xff]
        %v260 = vld [vmem:[%s220 + $0x80] sm:$0xff]
        %v261 = vld [vmem:[%s220 + $0x88] sm:$0xff]
        %v262 = vld [vmem:[%s220 + $0x90] sm:$0xff]
        %v263 = vld [vmem:[%s220 + $0x98] sm:$0xff]
        %v264 = vld [vmem:[%s220 + $0xa0] sm:$0xff]
        %v265 = vld [vmem:[%s220 + $0xa8] sm:$0xff]
        %v266 = vld [vmem:[%s220 + $0xb0] sm:$0xff]
        %v267 = vld [vmem:[%s220 + $0xb8] sm:$0xff]
        %v268 = vld [vmem:[%s220 + $0xc0] sm:$0xff]
        %v269 = vld [vmem:[%s220 + $0xc8] sm:$0xff]
        %v270 = vld [vmem:[%s220 + $0xd0] sm:$0xff]
        %v271 = vld [vmem:[%s220 + $0xd8] sm:$0xff]
        %v272 = vld [vmem:[%s220 + $0xe0] sm:$0xff]
        %v273 = vld [vmem:[%s220 + $0xe8] sm:$0xff]
        %v274 = vld [vmem:[%s220 + $0xf0] sm:$0xff]
        %v275 = vld [vmem:[%s220 + $0xf8] sm:$0xff]
        %v276 = vld [vmem:[%s220 + $0x100] sm:$0xff]
        %v277 = vld [vmem:[%s220 + $0x108] sm:$0xff]
        %v278 = vld [vmem:[%s220 + $0x110] sm:$0xff]
        %v279 = vld [vmem:[%s220 + $0x118] sm:$0xff]
        %v280 = vld [vmem:[%s220 + $0x120] sm:$0xff]
        %v281 = vld [vmem:[%s220 + $0x128] sm:$0xf]
        %v282 = vpack.c.bf16 %v245, %v244
        %v283 = vpack.c.bf16 %v247, %v246
        %v284 = vpack.c.bf16 %v249, %v248
        %v285 = vpack.c.bf16 %v251, %v250
        %v286 = vpack.c.bf16 %v253, %v252
        %v287 = vpack.c.bf16 %v255, %v254
        %v288 = vpack.c.bf16 %v257, %v256
        %v289 = vpack.c.bf16 %v259, %v258
        %v290 = vpack.c.bf16 %v261, %v260
        %v291 = vpack.c.bf16 %v263, %v262
        %v292 = vpack.c.bf16 %v265, %v264
        %v293 = vpack.c.bf16 %v267, %v266
        %v294 = vpack.c.bf16 %v269, %v268
        %v295 = vpack.c.bf16 %v271, %v270
        %v296 = vpack.c.bf16 %v273, %v272
        %v297 = vpack.c.bf16 %v275, %v274
        %v298 = vpack.c.bf16 %v277, %v276
        %v299 = vpack.c.bf16 %v279, %v278
        %v300 = vpack.c.bf16 %v281, %v280
        %v301 = vld [vmem:[%s1] sm:$0xf]
        %v302 = vld [vmem:[%s1 + $0x4] sm:$0xf]
        %v303 = vld [vmem:[%s1 + $0x8] sm:$0xf]
        %v304 = vld [vmem:[%s1 + $0xc] sm:$0xf]
        %v309 = vunpack.c.l.b16 %v301
        %v310 = vunpack.c.l.b16 %v302
        %v311 = vunpack.c.l.b16 %v303
        %v312 = vunpack.c.l.b16 %v304
        %v313 = vpack.c.b16 %v310, %v309
        %v314 = vpack.c.b16 %v312, %v311
        %vm317 = vcmask 261120
        %v319 = vsel %vm317, %v282, 0
        %v322 = vsel %vm317, %v283, 0
        %v325 = vsel %vm317, %v284, 0
        %v328 = vsel %vm317, %v285, 0
        %v331 = vsel %vm317, %v286, 0
        %v334 = vsel %vm317, %v287, 0
        %v337 = vsel %vm317, %v288, 0
        %v340 = vsel %vm317, %v289, 0
        %v343 = vsel %vm317, %v290, 0
        %v346 = vsel %vm317, %v291, 0
        %v349 = vsel %vm317, %v292, 0
        %v352 = vsel %vm317, %v293, 0
        %v355 = vsel %vm317, %v294, 0
        %v358 = vsel %vm317, %v295, 0
        %v361 = vsel %vm317, %v296, 0
        %v364 = vsel %vm317, %v297, 0
        %v367 = vsel %vm317, %v298, 0
        %v370 = vsel %vm317, %v299, 0
        %v373 = vsel %vm317, %v300, 0
        %375 = vmatprep.subr.bf16.mxu0 0
        %376 = vmatpush1.bf16.msra.mxu0 %v313
        %377 = vmatprep.subr.bf16.mxu0 0
        %378 = vmatpush1.bf16.msra.mxu0 %v314
        %379 = vmatprep.subr.bf16.mxu0 0
        %380 = vmatpush1.bf16.msra.mxu0 0
        %381 = vmatprep.subr.bf16.mxu0 0
        %382 = vmatpush1.bf16.msra.mxu0 0
        %383 = vmatprep.subr.bf16.mxu0 0
        %384 = vmatpush1.bf16.msra.mxu0 0
        %385 = vmatprep.subr.bf16.mxu0 0
        %386 = vmatpush1.bf16.msra.mxu0 0
        %387 = vmatprep.subr.bf16.mxu0 0
        %388 = vmatpush1.bf16.msra.mxu0 0
        %389 = vmatprep.subr.bf16.mxu0 0
        %390 = vmatpush1.bf16.msra.mxu0 0
        %391 = vmatprep.subr.bf16.mxu0 0
        %392 = vmatpush1.bf16.msra.mxu0 0
        %393 = vmatprep.subr.bf16.mxu0 0
        %394 = vmatpush1.bf16.msra.mxu0 0
        %395 = vmatprep.subr.bf16.mxu0 0
        %396 = vmatpush1.bf16.msra.mxu0 0
        %397 = vmatprep.subr.bf16.mxu0 0
        %398 = vmatpush1.bf16.msra.mxu0 0
        %399 = vmatprep.subr.bf16.mxu0 0
        %400 = vmatpush1.bf16.msra.mxu0 0
        %401 = vmatprep.subr.bf16.mxu0 0
        %402 = vmatpush1.bf16.msra.mxu0 0
        %403 = vmatprep.subr.bf16.mxu0 0
        %404 = vmatpush1.bf16.msra.mxu0 0
        %405 = vmatprep.subr.bf16.mxu0 0
        %406 = vmatpush1.bf16.msra.mxu0 0
        %407 = vmatprep.mubr.bf16.mxu0 0
        %408 = vmatmul.mubr.bf16.gmra.mrb[0].mxu0 %v319
        %v409 = vpop.f32.mrb[0].mxu0
        %v410 = vadd.f32 0.0, %v409
        %v411 = vpop.f32.mrb[0].mxu0
        %v412 = vpop.f32.mrb[0].mxu0
        %v413 = vadd.f32 0.0, %v412
        %v414 = vpop.f32.mrb[0].mxu0
        %415 = vmatprep.mubr.bf16.mxu0 0
        %416 = vmatmul.mubr.bf16.gmra.mrb[0].mxu0 %v322
        %v417 = vpop.f32.mrb[0].mxu0
        %v418 = vadd.f32 0.0, %v417
        %v419 = vpop.f32.mrb[0].mxu0
        %v420 = vpop.f32.mrb[0].mxu0
        %v421 = vadd.f32 0.0, %v420
        %v422 = vpop.f32.mrb[0].mxu0
        %423 = vmatprep.mubr.bf16.mxu0 0
        %424 = vmatmul.mubr.bf16.gmra.mrb[0].mxu0 %v325
        %v425 = vpop.f32.mrb[0].mxu0
        %v426 = vadd.f32 0.0, %v425
        %v427 = vpop.f32.mrb[0].mxu0
        %v428 = vpop.f32.mrb[0].mxu0
        %v429 = vadd.f32 0.0, %v428
        %v430 = vpop.f32.mrb[0].mxu0
        %431 = vmatprep.mubr.bf16.mxu0 0
        %432 = vmatmul.mubr.bf16.gmra.mrb[0].mxu0 %v328
        %v433 = vpop.f32.mrb[0].mxu0
        %v434 = vadd.f32 0.0, %v433
        %v435 = vpop.f32.mrb[0].mxu0
        %v436 = vpop.f32.mrb[0].mxu0
        %v437 = vadd.f32 0.0, %v436
        %v438 = vpop.f32.mrb[0].mxu0
        %439 = vmatprep.mubr.bf16.mxu0 0
        %440 = vmatmul.mubr.bf16.gmra.mrb[0].mxu0 %v331
        %v441 = vpop.f32.mrb[0].mxu0
        %v442 = vadd.f32 0.0, %v441
        %v443 = vpop.f32.mrb[0].mxu0
        %v444 = vpop.f32.mrb[0].mxu0
        %v445 = vadd.f32 0.0, %v444
        %v446 = vpop.f32.mrb[0].mxu0
        %447 = vmatprep.mubr.bf16.mxu0 0
        %448 = vmatmul.mubr.bf16.gmra.mrb[0].mxu0 %v334
        %v449 = vpop.f32.mrb[0].mxu0
        %v450 = vadd.f32 0.0, %v449
        %v451 = vpop.f32.mrb[0].mxu0
        %v452 = vpop.f32.mrb[0].mxu0
        %v453 = vadd.f32 0.0, %v452
        %v454 = vpop.f32.mrb[0].mxu0
        %455 = vmatprep.mubr.bf16.mxu0 0
        %456 = vmatmul.mubr.bf16.gmra.mrb[0].mxu0 %v337
        %v457 = vpop.f32.mrb[0].mxu0
        %v458 = vadd.f32 0.0, %v457
        %v459 = vpop.f32.mrb[0].mxu0
        %v460 = vpop.f32.mrb[0].mxu0
        %v461 = vadd.f32 0.0, %v460
        %v462 = vpop.f32.mrb[0].mxu0
        %463 = vmatprep.mubr.bf16.mxu0 0
        %464 = vmatmul.mubr.bf16.gmra.mrb[0].mxu0 %v340
        %v465 = vpop.f32.mrb[0].mxu0
        %v466 = vadd.f32 0.0, %v465
        %v467 = vpop.f32.mrb[0].mxu0
        %v468 = vpop.f32.mrb[0].mxu0
        %v469 = vadd.f32 0.0, %v468
        %v470 = vpop.f32.mrb[0].mxu0
        %471 = vmatprep.mubr.bf16.mxu0 0
        %472 = vmatmul.mubr.bf16.gmra.mrb[0].mxu0 %v343
        %v473 = vpop.f32.mrb[0].mxu0
        %v474 = vadd.f32 0.0, %v473
        %v475 = vpop.f32.mrb[0].mxu0
        %v476 = vpop.f32.mrb[0].mxu0
        %v477 = vadd.f32 0.0, %v476
        %v478 = vpop.f32.mrb[0].mxu0
        %479 = vmatprep.mubr.bf16.mxu0 0
        %480 = vmatmul.mubr.bf16.gmra.mrb[0].mxu0 %v346
        %v481 = vpop.f32.mrb[0].mxu0
        %v482 = vadd.f32 0.0, %v481
        %v483 = vpop.f32.mrb[0].mxu0
        %v484 = vpop.f32.mrb[0].mxu0
        %v485 = vadd.f32 0.0, %v484
        %v486 = vpop.f32.mrb[0].mxu0
        %487 = vmatprep.mubr.bf16.mxu0 0
        %488 = vmatmul.mubr.bf16.gmra.mrb[0].mxu0 %v349
        %v489 = vpop.f32.mrb[0].mxu0
        %v490 = vadd.f32 0.0, %v489
        %v491 = vpop.f32.mrb[0].mxu0
        %v492 = vpop.f32.mrb[0].mxu0
        %v493 = vadd.f32 0.0, %v492
        %v494 = vpop.f32.mrb[0].mxu0
        %495 = vmatprep.mubr.bf16.mxu0 0
        %496 = vmatmul.mubr.bf16.gmra.mrb[0].mxu0 %v352
        %v497 = vpop.f32.mrb[0].mxu0
        %v498 = vadd.f32 0.0, %v497
        %v499 = vpop.f32.mrb[0].mxu0
        %v500 = vpop.f32.mrb[0].mxu0
        %v501 = vadd.f32 0.0, %v500
        %v502 = vpop.f32.mrb[0].mxu0
        %503 = vmatprep.mubr.bf16.mxu0 0
        %504 = vmatmul.mubr.bf16.gmra.mrb[0].mxu0 %v355
        %v505 = vpop.f32.mrb[0].mxu0
        %v506 = vadd.f32 0.0, %v505
        %v507 = vpop.f32.mrb[0].mxu0
        %v508 = vpop.f32.mrb[0].mxu0
        %v509 = vadd.f32 0.0, %v508
        %v510 = vpop.f32.mrb[0].mxu0
        %511 = vmatprep.mubr.bf16.mxu0 0
        %512 = vmatmul.mubr.bf16.gmra.mrb[0].mxu0 %v358
        %v513 = vpop.f32.mrb[0].mxu0
        %v514 = vadd.f32 0.0, %v513
        %v515 = vpop.f32.mrb[0].mxu0
        %v516 = vpop.f32.mrb[0].mxu0
        %v517 = vadd.f32 0.0, %v516
        %v518 = vpop.f32.mrb[0].mxu0
        %519 = vmatprep.mubr.bf16.mxu0 0
        %520 = vmatmul.mubr.bf16.gmra.mrb[0].mxu0 %v361
        %v521 = vpop.f32.mrb[0].mxu0
        %v522 = vadd.f32 0.0, %v521
        %v523 = vpop.f32.mrb[0].mxu0
        %v524 = vpop.f32.mrb[0].mxu0
        %v525 = vadd.f32 0.0, %v524
        %v526 = vpop.f32.mrb[0].mxu0
        %527 = vmatprep.mubr.bf16.mxu0 0
        %528 = vmatmul.mubr.bf16.gmra.mrb[0].mxu0 %v364
        %v529 = vpop.f32.mrb[0].mxu0
        %v530 = vadd.f32 0.0, %v529
        %v531 = vpop.f32.mrb[0].mxu0
        %v532 = vpop.f32.mrb[0].mxu0
        %v533 = vadd.f32 0.0, %v532
        %v534 = vpop.f32.mrb[0].mxu0
        %535 = vmatprep.mubr.bf16.mxu0 0
        %536 = vmatmul.mubr.bf16.gmra.mrb[0].mxu0 %v367
        %v537 = vpop.f32.mrb[0].mxu0
        %v538 = vadd.f32 0.0, %v537
        %v539 = vpop.f32.mrb[0].mxu0
        %v540 = vpop.f32.mrb[0].mxu0
        %v541 = vadd.f32 0.0, %v540
        %v542 = vpop.f32.mrb[0].mxu0
        %543 = vmatprep.mubr.bf16.mxu0 0
        %544 = vmatmul.mubr.bf16.gmra.mrb[0].mxu0 %v370
        %v545 = vpop.f32.mrb[0].mxu0
        %v546 = vadd.f32 0.0, %v545
        %v547 = vpop.f32.mrb[0].mxu0
        %v548 = vpop.f32.mrb[0].mxu0
        %v549 = vadd.f32 0.0, %v548
        %v550 = vpop.f32.mrb[0].mxu0
        %551 = vmatprep.mubr.bf16.mxu0 0
        %552 = vmatmul.mubr.bf16.gmra.mrb[0].mxu0 %v373
        %v553 = vpop.f32.mrb[0].mxu0
        %v554 = vadd.f32 0.0, %v553
        %v555 = vpop.f32.mrb[0].mxu0
        %v556 = vpop.f32.mrb[0].mxu0
        %v557 = vadd.f32 0.0, %v556
        %v558 = vpop.f32.mrb[0].mxu0
        %559 = vdwg.mxu0
        %s560 = smul.u32 %s20, 304
        %s561 = scalar_lea.vmem [#allocation2], %s560
        %562 = vst [vmem:[%s561] sm:$0xff] %v410
        %563 = vst [vmem:[%s561 + $0x8] sm:$0xff] %v413
        %564 = vst [vmem:[%s561 + $0x10] sm:$0xff] %v418
        %565 = vst [vmem:[%s561 + $0x18] sm:$0xff] %v421
        %566 = vst [vmem:[%s561 + $0x20] sm:$0xff] %v426
        %567 = vst [vmem:[%s561 + $0x28] sm:$0xff] %v429
        %568 = vst [vmem:[%s561 + $0x30] sm:$0xff] %v434
        %569 = vst [vmem:[%s561 + $0x38] sm:$0xff] %v437
        %570 = vst [vmem:[%s561 + $0x40] sm:$0xff] %v442
        %571 = vst [vmem:[%s561 + $0x48] sm:$0xff] %v445
        %572 = vst [vmem:[%s561 + $0x50] sm:$0xff] %v450
        %573 = vst [vmem:[%s561 + $0x58] sm:$0xff] %v453
        %574 = vst [vmem:[%s561 + $0x60] sm:$0xff] %v458
        %575 = vst [vmem:[%s561 + $0x68] sm:$0xff] %v461
        %576 = vst [vmem:[%s561 + $0x70] sm:$0xff] %v466
        %577 = vst [vmem:[%s561 + $0x78] sm:$0xff] %v469
        %578 = vst [vmem:[%s561 + $0x80] sm:$0xff] %v474
        %579 = vst [vmem:[%s561 + $0x88] sm:$0xff] %v477
        %580 = vst [vmem:[%s561 + $0x90] sm:$0xff] %v482
        %581 = vst [vmem:[%s561 + $0x98] sm:$0xff] %v485
        %582 = vst [vmem:[%s561 + $0xa0] sm:$0xff] %v490
        %583 = vst [vmem:[%s561 + $0xa8] sm:$0xff] %v493
        %584 = vst [vmem:[%s561 + $0xb0] sm:$0xff] %v498
        %585 = vst [vmem:[%s561 + $0xb8] sm:$0xff] %v501
        %586 = vst [vmem:[%s561 + $0xc0] sm:$0xff] %v506
        %587 = vst [vmem:[%s561 + $0xc8] sm:$0xff] %v509
        %588 = vst [vmem:[%s561 + $0xd0] sm:$0xff] %v514
        %589 = vst [vmem:[%s561 + $0xd8] sm:$0xff] %v517
        %590 = vst [vmem:[%s561 + $0xe0] sm:$0xff] %v522
        %591 = vst [vmem:[%s561 + $0xe8] sm:$0xff] %v525
        %592 = vst [vmem:[%s561 + $0xf0] sm:$0xff] %v530
        %593 = vst [vmem:[%s561 + $0xf8] sm:$0xff] %v533
        %594 = vst [vmem:[%s561 + $0x100] sm:$0xff] %v538
        %595 = vst [vmem:[%s561 + $0x108] sm:$0xff] %v541
        %596 = vst [vmem:[%s561 + $0x110] sm:$0xff] %v546
        %597 = vst [vmem:[%s561 + $0x118] sm:$0xff] %v549
        %598 = vst [vmem:[%s561 + $0x120] sm:$0xff] %v554
        %599 = vst [vmem:[%s561 + $0x128] sm:$0xf] %v557
        %v600 = vlaneseq
        %v601 = vshrl.u32 %v600, 7
        %v602 = vadd.s32 %v601, 8
        %v603 = vadd.s32 %v601, 16
        %v604 = vadd.s32 %v601, 24
        %v605 = vadd.s32 %v601, 32
        %v606 = vadd.s32 %v601, 40
        %v607 = vadd.s32 %v601, 48
        %v608 = vadd.s32 %v601, 56
        %v609 = vadd.s32 %v601, 64
        %v610 = vadd.s32 %v601, 72
        %v611 = vadd.s32 %v601, 80
        %v612 = vadd.s32 %v601, 88
        %v613 = vadd.s32 %v601, 96
        %v614 = vadd.s32 %v601, 104
        %v615 = vadd.s32 %v601, 112
        %v616 = vadd.s32 %v601, 120
        %v617 = vadd.s32 %v601, 128
        %v618 = vadd.s32 %v601, 136
        %v619 = vadd.s32 %v601, 144
        %v620 = vadd.s32 %v601, 152
        %v621 = vadd.s32 %v601, 160
        %v622 = vadd.s32 %v601, 168
        %v623 = vadd.s32 %v601, 176
        %v624 = vadd.s32 %v601, 184
        %v625 = vadd.s32 %v601, 192
        %v626 = vadd.s32 %v601, 200
        %v627 = vadd.s32 %v601, 208
        %v628 = vadd.s32 %v601, 216
        %v629 = vadd.s32 %v601, 224
        %v630 = vadd.s32 %v601, 232
        %v631 = vadd.s32 %v601, 240
        %v632 = vadd.s32 %v601, 248
        %v633 = vadd.s32 %v601, 256
        %v634 = vadd.s32 %v601, 264
        %v635 = vadd.s32 %v601, 272
        %v636 = vadd.s32 %v601, 280
        %v637 = vadd.s32 %v601, 288
        %v638 = vadd.s32 %v601, 296
        %s639 = smul.u32 %s20, 300
        %v640 = vstv %s639
        %v641 = vadd.s32 %v601, %v640
        %v642 = vadd.s32 %v602, %v640
        %v643 = vadd.s32 %v603, %v640
        %v644 = vadd.s32 %v604, %v640
        %v645 = vadd.s32 %v605, %v640
        %v646 = vadd.s32 %v606, %v640
        %v647 = vadd.s32 %v607, %v640
        %v648 = vadd.s32 %v608, %v640
        %v649 = vadd.s32 %v609, %v640
        %v650 = vadd.s32 %v610, %v640
        %v651 = vadd.s32 %v611, %v640
        %v652 = vadd.s32 %v612, %v640
        %v653 = vadd.s32 %v613, %v640
        %v654 = vadd.s32 %v614, %v640
        %v655 = vadd.s32 %v615, %v640
        %v656 = vadd.s32 %v616, %v640
        %v657 = vadd.s32 %v617, %v640
        %v658 = vadd.s32 %v618, %v640
        %v659 = vadd.s32 %v619, %v640
        %v660 = vadd.s32 %v620, %v640
        %v661 = vadd.s32 %v621, %v640
        %v662 = vadd.s32 %v622, %v640
        %v663 = vadd.s32 %v623, %v640
        %v664 = vadd.s32 %v624, %v640
        %v665 = vadd.s32 %v625, %v640
        %v666 = vadd.s32 %v626, %v640
        %v667 = vadd.s32 %v627, %v640
        %v668 = vadd.s32 %v628, %v640
        %v669 = vadd.s32 %v629, %v640
        %v670 = vadd.s32 %v630, %v640
        %v671 = vadd.s32 %v631, %v640
        %v672 = vadd.s32 %v632, %v640
        %v673 = vadd.s32 %v633, %v640
        %v674 = vadd.s32 %v634, %v640
        %v675 = vadd.s32 %v635, %v640
        %v676 = vadd.s32 %v636, %v640
        %v677 = vadd.s32 %v637, %v640
        %v678 = vadd.s32 %v638, %v640
        %vm679 = vcmp.lt.s32.totalorder %v641, 300
        %vm680 = vcmp.lt.s32.totalorder %v642, 300
        %vm681 = vcmp.lt.s32.totalorder %v643, 300
        %vm682 = vcmp.lt.s32.totalorder %v644, 300
        %vm683 = vcmp.lt.s32.totalorder %v645, 300
        %vm684 = vcmp.lt.s32.totalorder %v646, 300
        %vm685 = vcmp.lt.s32.totalorder %v647, 300
        %vm686 = vcmp.lt.s32.totalorder %v648, 300
        %vm687 = vcmp.lt.s32.totalorder %v649, 300
        %vm688 = vcmp.lt.s32.totalorder %v650, 300
        %vm689 = vcmp.lt.s32.totalorder %v651, 300
        %vm690 = vcmp.lt.s32.totalorder %v652, 300
        %vm691 = vcmp.lt.s32.totalorder %v653, 300
        %vm692 = vcmp.lt.s32.totalorder %v654, 300
        %vm693 = vcmp.lt.s32.totalorder %v655, 300
        %vm694 = vcmp.lt.s32.totalorder %v656, 300
        %vm695 = vcmp.lt.s32.totalorder %v657, 300
        %vm696 = vcmp.lt.s32.totalorder %v658, 300
        %vm697 = vcmp.lt.s32.totalorder %v659, 300
        %vm698 = vcmp.lt.s32.totalorder %v660, 300
        %vm699 = vcmp.lt.s32.totalorder %v661, 300
        %vm700 = vcmp.lt.s32.totalorder %v662, 300
        %vm701 = vcmp.lt.s32.totalorder %v663, 300
        %vm702 = vcmp.lt.s32.totalorder %v664, 300
        %vm703 = vcmp.lt.s32.totalorder %v665, 300
        %vm704 = vcmp.lt.s32.totalorder %v666, 300
        %vm705 = vcmp.lt.s32.totalorder %v667, 300
        %vm706 = vcmp.lt.s32.totalorder %v668, 300
        %vm707 = vcmp.lt.s32.totalorder %v669, 300
        %vm708 = vcmp.lt.s32.totalorder %v670, 300
        %vm709 = vcmp.lt.s32.totalorder %v671, 300
        %vm710 = vcmp.lt.s32.totalorder %v672, 300
        %vm711 = vcmp.lt.s32.totalorder %v673, 300
        %vm712 = vcmp.lt.s32.totalorder %v674, 300
        %vm713 = vcmp.lt.s32.totalorder %v675, 300
        %vm714 = vcmp.lt.s32.totalorder %v676, 300
        %vm715 = vcmp.lt.s32.totalorder %v677, 300
        %vm716 = vcmp.lt.s32.totalorder %v678, 300
        %v717 = vsel %vm679, %v410, 0.0
        %v718 = vsel %vm680, %v413, 0.0
        %v719 = vsel %vm681, %v418, 0.0
        %v720 = vsel %vm682, %v421, 0.0
        %v721 = vsel %vm683, %v426, 0.0
        %v722 = vsel %vm684, %v429, 0.0
        %v723 = vsel %vm685, %v434, 0.0
        %v724 = vsel %vm686, %v437, 0.0
        %v725 = vsel %vm687, %v442, 0.0
        %v726 = vsel %vm688, %v445, 0.0
        %v727 = vsel %vm689, %v450, 0.0
        %v728 = vsel %vm690, %v453, 0.0
        %v729 = vsel %vm691, %v458, 0.0
        %v730 = vsel %vm692, %v461, 0.0
        %v731 = vsel %vm693, %v466, 0.0
        %v732 = vsel %vm694, %v469, 0.0
        %v733 = vsel %vm695, %v474, 0.0
        %v734 = vsel %vm696, %v477, 0.0
        %v735 = vsel %vm697, %v482, 0.0
        %v736 = vsel %vm698, %v485, 0.0
        %v737 = vsel %vm699, %v490, 0.0
        %v738 = vsel %vm700, %v493, 0.0
        %v739 = vsel %vm701, %v498, 0.0
        %v740 = vsel %vm702, %v501, 0.0
        %v741 = vsel %vm703, %v506, 0.0
        %v742 = vsel %vm704, %v509, 0.0
        %v743 = vsel %vm705, %v514, 0.0
        %v744 = vsel %vm706, %v517, 0.0
        %v745 = vsel %vm707, %v522, 0.0
        %v746 = vsel %vm708, %v525, 0.0
        %v747 = vsel %vm709, %v530, 0.0
        %v748 = vsel %vm710, %v533, 0.0
        %v749 = vsel %vm711, %v538, 0.0
        %v750 = vsel %vm712, %v541, 0.0
        %v751 = vsel %vm713, %v546, 0.0
        %v752 = vsel %vm714, %v549, 0.0
        %v753 = vsel %vm715, %v554, 0.0
        %v754 = vsel %vm716, %v557, 0.0
        %v755 = vld [vmem:[#allocation3] sm:$0x1]
        %v756 = vadd.f32 %v717, %v718
        %v757 = vadd.f32 %v756, %v719
        %v758 = vadd.f32 %v757, %v720
        %v759 = vadd.f32 %v758, %v721
        %v760 = vadd.f32 %v759, %v722
        %v761 = vadd.f32 %v760, %v723
        %v762 = vadd.f32 %v761, %v724
        %v763 = vadd.f32 %v762, %v725
        %v764 = vadd.f32 %v763, %v726
        %v765 = vadd.f32 %v764, %v727
        %v766 = vadd.f32 %v765, %v728
        %v767 = vadd.f32 %v766, %v729
        %v768 = vadd.f32 %v767, %v730
        %v769 = vadd.f32 %v768, %v731
        %v770 = vadd.f32 %v769, %v732
        %v771 = vadd.f32 %v770, %v733
        %v772 = vadd.f32 %v771, %v734
        %v773 = vadd.f32 %v772, %v735
        %v774 = vadd.f32 %v773, %v736
        %v775 = vadd.f32 %v774, %v737
        %v776 = vadd.f32 %v775, %v738
        %v777 = vadd.f32 %v776, %v739
        %v778 = vadd.f32 %v777, %v740
        %v779 = vadd.f32 %v778, %v741
        %v780 = vadd.f32 %v779, %v742
        %v781 = vadd.f32 %v780, %v743
        %v782 = vadd.f32 %v781, %v744
        %v783 = vadd.f32 %v782, %v745
        %v784 = vadd.f32 %v783, %v746
        %v785 = vadd.f32 %v784, %v747
        %v786 = vadd.f32 %v785, %v748
        %v787 = vadd.f32 %v786, %v749
        %v788 = vadd.f32 %v787, %v750
        %v789 = vadd.f32 %v788, %v751
        %v790 = vadd.f32 %v789, %v752
        %v791 = vadd.f32 %v790, %v753
        %vm792 = vcmask 1043456
        %v793 = vsel %vm792, %v754, 0.0
        %v794 = vadd.f32 %v791, %v793
        %v795 = vrot.slane %v794, 4
        %v796 = vadd.f32 %v794, %v795
        %v797 = vrot.slane %v796, 2
        %v798 = vadd.f32 %v796, %v797
        %v799 = vrot.slane %v798, 1
        %v800 = vadd.f32 %v798, %v799
        %v801 = vadd.f32 %v755, %v800
        %802 = vst [vmem:[#allocation3] sm:$0x1] %v801
        %v803 = vld [vmem:[#allocation4] sm:$0x1]
        %v804 = vmul.f32 %v717, %v717
        %v805 = vmul.f32 %v718, %v718
        %v806 = vmul.f32 %v719, %v719
        %v807 = vmul.f32 %v720, %v720
        %v808 = vmul.f32 %v721, %v721
        %v809 = vmul.f32 %v722, %v722
        %v810 = vmul.f32 %v723, %v723
        %v811 = vmul.f32 %v724, %v724
        %v812 = vmul.f32 %v725, %v725
        %v813 = vmul.f32 %v726, %v726
        %v814 = vmul.f32 %v727, %v727
        %v815 = vmul.f32 %v728, %v728
        %v816 = vmul.f32 %v729, %v729
        %v817 = vmul.f32 %v730, %v730
        %v818 = vmul.f32 %v731, %v731
        %v819 = vmul.f32 %v732, %v732
        %v820 = vmul.f32 %v733, %v733
        %v821 = vmul.f32 %v734, %v734
        %v822 = vmul.f32 %v735, %v735
        %v823 = vmul.f32 %v736, %v736
        %v824 = vmul.f32 %v737, %v737
        %v825 = vmul.f32 %v738, %v738
        %v826 = vmul.f32 %v739, %v739
        %v827 = vmul.f32 %v740, %v740
        %v828 = vmul.f32 %v741, %v741
        %v829 = vmul.f32 %v742, %v742
        %v830 = vmul.f32 %v743, %v743
        %v831 = vmul.f32 %v744, %v744
        %v832 = vmul.f32 %v745, %v745
        %v833 = vmul.f32 %v746, %v746
        %v834 = vmul.f32 %v747, %v747
        %v835 = vmul.f32 %v748, %v748
        %v836 = vmul.f32 %v749, %v749
        %v837 = vmul.f32 %v750, %v750
        %v838 = vmul.f32 %v751, %v751
        %v839 = vmul.f32 %v752, %v752
        %v840 = vmul.f32 %v753, %v753
        %v841 = vmul.f32 %v754, %v754
        %v842 = vadd.f32 %v804, %v805
        %v843 = vadd.f32 %v842, %v806
        %v844 = vadd.f32 %v843, %v807
        %v845 = vadd.f32 %v844, %v808
        %v846 = vadd.f32 %v845, %v809
        %v847 = vadd.f32 %v846, %v810
        %v848 = vadd.f32 %v847, %v811
        %v849 = vadd.f32 %v848, %v812
        %v850 = vadd.f32 %v849, %v813
        %v851 = vadd.f32 %v850, %v814
        %v852 = vadd.f32 %v851, %v815
        %v853 = vadd.f32 %v852, %v816
        %v854 = vadd.f32 %v853, %v817
        %v855 = vadd.f32 %v854, %v818
        %v856 = vadd.f32 %v855, %v819
        %v857 = vadd.f32 %v856, %v820
        %v858 = vadd.f32 %v857, %v821
        %v859 = vadd.f32 %v858, %v822
        %v860 = vadd.f32 %v859, %v823
        %v861 = vadd.f32 %v860, %v824
        %v862 = vadd.f32 %v861, %v825
        %v863 = vadd.f32 %v862, %v826
        %v864 = vadd.f32 %v863, %v827
        %v865 = vadd.f32 %v864, %v828
        %v866 = vadd.f32 %v865, %v829
        %v867 = vadd.f32 %v866, %v830
        %v868 = vadd.f32 %v867, %v831
        %v869 = vadd.f32 %v868, %v832
        %v870 = vadd.f32 %v869, %v833
        %v871 = vadd.f32 %v870, %v834
        %v872 = vadd.f32 %v871, %v835
        %v873 = vadd.f32 %v872, %v836
        %v874 = vadd.f32 %v873, %v837
        %v875 = vadd.f32 %v874, %v838
        %v876 = vadd.f32 %v875, %v839
        %v877 = vadd.f32 %v876, %v840
        %v878 = vsel %vm792, %v841, 0.0
        %v879 = vadd.f32 %v877, %v878
        %v880 = vrot.slane %v879, 4
        %v881 = vadd.f32 %v879, %v880
        %v882 = vrot.slane %v881, 2
        %v883 = vadd.f32 %v881, %v882
        %v884 = vrot.slane %v883, 1
        %v885 = vadd.f32 %v883, %v884
        %v886 = vadd.f32 %v803, %v885
        %887 = vst [vmem:[#allocation4] sm:$0x1] %v886
      $region44: #{linear_unit_forward.1} parent=35 // pred_fallthru
        _
      // Predicated region
      $region45: #{linear_unit_forward.1} parent=35 // pred_check
        _
      $region46: #{linear_unit_forward.1} parent=35 // pred_check_branch
        %889 = sbr.rel (%p235) target = $region48
      $region47: #{linear_unit_forward.1} parent=35 // pred_region
        %v890 = vld [vmem:[#allocation3] sm:$0x1]
        %v891 = vmul.f32 %v890, 0.0033333334
        %v892 = vld [vmem:[#allocation4] sm:$0x1]
        %v893 = vmul.f32 %v892, 0.0033333334
        %v894 = vmul.f32 %v891, %v891
        %v895 = vsub.f32 %v893, %v894
        %v896 = vmax.f32 %v895, 0.0
        %v897 = vld [vmem:[%s2] sm:$0x1]
        %v898 = vadd.f32 %v896, 1e-05
        %v899 = vrsqrt.pop %v898
        %v900 = vmul.f32 %v897, %v899
        %901 = vst [vmem:[#allocation5] sm:$0x1] %v900
        %v902 = vld [vmem:[%s3] sm:$0x1]
        %v903 = vmul.f32 %v891, %v900
        %v904 = vsub.f32 %v902, %v903
        %905 = vst [vmem:[#allocation6] sm:$0x1] %v904
      $region48: #{linear_unit_forward.1} parent=35 // pred_fallthru
        _
      %p906 = scmp.eq.s32.totalorder %s19, 1
      // Predicated region
      $region49: #{linear_unit_forward.1} parent=35 // pred_check
        %p907 = pneg %p906
      $region50: #{linear_unit_forward.1} parent=35 // pred_check_branch
        %909 = sbr.rel (%p907) target = $region52
      $region51: #{linear_unit_forward.1} parent=35 // pred_region
        %s910 = smul.u32 %s20, 304
        %s911 = scalar_lea.vmem [#allocation2], %s910
        %v912 = vld [vmem:[%s911] sm:$0xff]
        %v913 = vld [vmem:[%s911 + $0x8] sm:$0xff]
        %v914 = vld [vmem:[%s911 + $0x10] sm:$0xff]
        %v915 = vld [vmem:[%s911 + $0x18] sm:$0xff]
        %v916 = vld [vmem:[%s911 + $0x20] sm:$0xff]
        %v917 = vld [vmem:[%s911 + $0x28] sm:$0xff]
        %v918 = vld [vmem:[%s911 + $0x30] sm:$0xff]
        %v919 = vld [vmem:[%s911 + $0x38] sm:$0xff]
        %v920 = vld [vmem:[%s911 + $0x40] sm:$0xff]
        %v921 = vld [vmem:[%s911 + $0x48] sm:$0xff]
        %v922 = vld [vmem:[%s911 + $0x50] sm:$0xff]
        %v923 = vld [vmem:[%s911 + $0x58] sm:$0xff]
        %v924 = vld [vmem:[%s911 + $0x60] sm:$0xff]
        %v925 = vld [vmem:[%s911 + $0x68] sm:$0xff]
        %v926 = vld [vmem:[%s911 + $0x70] sm:$0xff]
        %v927 = vld [vmem:[%s911 + $0x78] sm:$0xff]
        %v928 = vld [vmem:[%s911 + $0x80] sm:$0xff]
        %v929 = vld [vmem:[%s911 + $0x88] sm:$0xff]
        %v930 = vld [vmem:[%s911 + $0x90] sm:$0xff]
        %v931 = vld [vmem:[%s911 + $0x98] sm:$0xff]
        %v932 = vld [vmem:[%s911 + $0xa0] sm:$0xff]
        %v933 = vld [vmem:[%s911 + $0xa8] sm:$0xff]
        %v934 = vld [vmem:[%s911 + $0xb0] sm:$0xff]
        %v935 = vld [vmem:[%s911 + $0xb8] sm:$0xff]
        %v936 = vld [vmem:[%s911 + $0xc0] sm:$0xff]
        %v937 = vld [vmem:[%s911 + $0xc8] sm:$0xff]
        %v938 = vld [vmem:[%s911 + $0xd0] sm:$0xff]
        %v939 = vld [vmem:[%s911 + $0xd8] sm:$0xff]
        %v940 = vld [vmem:[%s911 + $0xe0] sm:$0xff]
        %v941 = vld [vmem:[%s911 + $0xe8] sm:$0xff]
        %v942 = vld [vmem:[%s911 + $0xf0] sm:$0xff]
        %v943 = vld [vmem:[%s911 + $0xf8] sm:$0xff]
        %v944 = vld [vmem:[%s911 + $0x100] sm:$0xff]
        %v945 = vld [vmem:[%s911 + $0x108] sm:$0xff]
        %v946 = vld [vmem:[%s911 + $0x110] sm:$0xff]
        %v947 = vld [vmem:[%s911 + $0x118] sm:$0xff]
        %v948 = vld [vmem:[%s911 + $0x120] sm:$0xff]
        %v949 = vld [vmem:[%s911 + $0x128] sm:$0xf]
        %v950 = vld [vmem:[#allocation5] sm:$0x1]
        %v952 = vlaneseq
        %v953 = vshrl.u32 %v952, 7
        %v954 = vsub.s32 0, %v953
        %v955 = vrot.slane %v950, %v954
        %v957 = vmul.f32 %v912, %v955
        %v958 = vmul.f32 %v913, %v955
        %v959 = vmul.f32 %v914, %v955
        %v960 = vmul.f32 %v915, %v955
        %v961 = vmul.f32 %v916, %v955
        %v962 = vmul.f32 %v917, %v955
        %v963 = vmul.f32 %v918, %v955
        %v964 = vmul.f32 %v919, %v955
        %v965 = vmul.f32 %v920, %v955
        %v966 = vmul.f32 %v921, %v955
        %v967 = vmul.f32 %v922, %v955
        %v968 = vmul.f32 %v923, %v955
        %v969 = vmul.f32 %v924, %v955
        %v970 = vmul.f32 %v925, %v955
        %v971 = vmul.f32 %v926, %v955
        %v972 = vmul.f32 %v927, %v955
        %v973 = vmul.f32 %v928, %v955
        %v974 = vmul.f32 %v929, %v955
        %v975 = vmul.f32 %v930, %v955
        %v976 = vmul.f32 %v931, %v955
        %v977 = vmul.f32 %v932, %v955
        %v978 = vmul.f32 %v933, %v955
        %v979 = vmul.f32 %v934, %v955
        %v980 = vmul.f32 %v935, %v955
        %v981 = vmul.f32 %v936, %v955
        %v982 = vmul.f32 %v937, %v955
        %v983 = vmul.f32 %v938, %v955
        %v984 = vmul.f32 %v939, %v955
        %v985 = vmul.f32 %v940, %v955
        %v986 = vmul.f32 %v941, %v955
        %v987 = vmul.f32 %v942, %v955
        %v988 = vmul.f32 %v943, %v955
        %v989 = vmul.f32 %v944, %v955
        %v990 = vmul.f32 %v945, %v955
        %v991 = vmul.f32 %v946, %v955
        %v992 = vmul.f32 %v947, %v955
        %v993 = vmul.f32 %v948, %v955
        %v994 = vmul.f32 %v949, %v955
        %v995 = vld [vmem:[#allocation6] sm:$0x1]
        %v997 = vlaneseq
        %v998 = vshrl.u32 %v997, 7
        %v999 = vsub.s32 0, %v998
        %v1000 = vrot.slane %v995, %v999
        %v1002 = vadd.f32 %v957, %v1000
        %v1003 = vadd.f32 %v958, %v1000
        %v1004 = vadd.f32 %v959, %v1000
        %v1005 = vadd.f32 %v960, %v1000
        %v1006 = vadd.f32 %v961, %v1000
        %v1007 = vadd.f32 %v962, %v1000
        %v1008 = vadd.f32 %v963, %v1000
        %v1009 = vadd.f32 %v964, %v1000
        %v1010 = vadd.f32 %v965, %v1000
        %v1011 = vadd.f32 %v966, %v1000
        %v1012 = vadd.f32 %v967, %v1000
        %v1013 = vadd.f32 %v968, %v1000
        %v1014 = vadd.f32 %v969, %v1000
        %v1015 = vadd.f32 %v970, %v1000
        %v1016 = vadd.f32 %v971, %v1000
        %v1017 = vadd.f32 %v972, %v1000
        %v1018 = vadd.f32 %v973, %v1000
        %v1019 = vadd.f32 %v974, %v1000
        %v1020 = vadd.f32 %v975, %v1000
        %v1021 = vadd.f32 %v976, %v1000
        %v1022 = vadd.f32 %v977, %v1000
        %v1023 = vadd.f32 %v978, %v1000
        %v1024 = vadd.f32 %v979, %v1000
        %v1025 = vadd.f32 %v980, %v1000
        %v1026 = vadd.f32 %v981, %v1000
        %v1027 = vadd.f32 %v982, %v1000
        %v1028 = vadd.f32 %v983, %v1000
        %v1029 = vadd.f32 %v984, %v1000
        %v1030 = vadd.f32 %v985, %v1000
        %v1031 = vadd.f32 %v986, %v1000
        %v1032 = vadd.f32 %v987, %v1000
        %v1033 = vadd.f32 %v988, %v1000
        %v1034 = vadd.f32 %v989, %v1000
        %v1035 = vadd.f32 %v990, %v1000
        %v1036 = vadd.f32 %v991, %v1000
        %v1037 = vadd.f32 %v992, %v1000
        %v1038 = vadd.f32 %v993, %v1000
        %v1039 = vadd.f32 %v994, %v1000
        %v1040 = vmul.f32 %v1002, 0.2
        %v1041 = vmul.f32 %v1003, 0.2
        %v1042 = vmul.f32 %v1004, 0.2
        %v1043 = vmul.f32 %v1005, 0.2
        %v1044 = vmul.f32 %v1006, 0.2
        %v1045 = vmul.f32 %v1007, 0.2
        %v1046 = vmul.f32 %v1008, 0.2
        %v1047 = vmul.f32 %v1009, 0.2
        %v1048 = vmul.f32 %v1010, 0.2
        %v1049 = vmul.f32 %v1011, 0.2
        %v1050 = vmul.f32 %v1012, 0.2
        %v1051 = vmul.f32 %v1013, 0.2
        %v1052 = vmul.f32 %v1014, 0.2
        %v1053 = vmul.f32 %v1015, 0.2
        %v1054 = vmul.f32 %v1016, 0.2
        %v1055 = vmul.f32 %v1017, 0.2
        %v1056 = vmul.f32 %v1018, 0.2
        %v1057 = vmul.f32 %v1019, 0.2
        %v1058 = vmul.f32 %v1020, 0.2
        %v1059 = vmul.f32 %v1021, 0.2
        %v1060 = vmul.f32 %v1022, 0.2
        %v1061 = vmul.f32 %v1023, 0.2
        %v1062 = vmul.f32 %v1024, 0.2
        %v1063 = vmul.f32 %v1025, 0.2
        %v1064 = vmul.f32 %v1026, 0.2
        %v1065 = vmul.f32 %v1027, 0.2
        %v1066 = vmul.f32 %v1028, 0.2
        %v1067 = vmul.f32 %v1029, 0.2
        %v1068 = vmul.f32 %v1030, 0.2
        %v1069 = vmul.f32 %v1031, 0.2
        %v1070 = vmul.f32 %v1032, 0.2
        %v1071 = vmul.f32 %v1033, 0.2
        %v1072 = vmul.f32 %v1034, 0.2
        %v1073 = vmul.f32 %v1035, 0.2
        %v1074 = vmul.f32 %v1036, 0.2
        %v1075 = vmul.f32 %v1037, 0.2
        %v1076 = vmul.f32 %v1038, 0.2
        %v1077 = vmul.f32 %v1039, 0.2
        %v1078 = vmax.f32 %v1002, %v1040
        %v1079 = vmax.f32 %v1003, %v1041
        %v1080 = vmax.f32 %v1004, %v1042
        %v1081 = vmax.f32 %v1005, %v1043
        %v1082 = vmax.f32 %v1006, %v1044
        %v1083 = vmax.f32 %v1007, %v1045
        %v1084 = vmax.f32 %v1008, %v1046
        %v1085 = vmax.f32 %v1009, %v1047
        %v1086 = vmax.f32 %v1010, %v1048
        %v1087 = vmax.f32 %v1011, %v1049
        %v1088 = vmax.f32 %v1012, %v1050
        %v1089 = vmax.f32 %v1013, %v1051
        %v1090 = vmax.f32 %v1014, %v1052
        %v1091 = vmax.f32 %v1015, %v1053
        %v1092 = vmax.f32 %v1016, %v1054
        %v1093 = vmax.f32 %v1017, %v1055
        %v1094 = vmax.f32 %v1018, %v1056
        %v1095 = vmax.f32 %v1019, %v1057
        %v1096 = vmax.f32 %v1020, %v1058
        %v1097 = vmax.f32 %v1021, %v1059
        %v1098 = vmax.f32 %v1022, %v1060
        %v1099 = vmax.f32 %v1023, %v1061
        %v1100 = vmax.f32 %v1024, %v1062
        %v1101 = vmax.f32 %v1025, %v1063
        %v1102 = vmax.f32 %v1026, %v1064
        %v1103 = vmax.f32 %v1027, %v1065
        %v1104 = vmax.f32 %v1028, %v1066
        %v1105 = vmax.f32 %v1029, %v1067
        %v1106 = vmax.f32 %v1030, %v1068
        %v1107 = vmax.f32 %v1031, %v1069
        %v1108 = vmax.f32 %v1032, %v1070
        %v1109 = vmax.f32 %v1033, %v1071
        %v1110 = vmax.f32 %v1034, %v1072
        %v1111 = vmax.f32 %v1035, %v1073
        %v1112 = vmax.f32 %v1036, %v1074
        %v1113 = vmax.f32 %v1037, %v1075
        %v1114 = vmax.f32 %v1038, %v1076
        %v1115 = vmax.f32 %v1039, %v1077
        %1116 = vst [vmem:[%s229] sm:$0xff] %v1078
        %1117 = vst [vmem:[%s229 + $0x8] sm:$0xff] %v1079
        %1118 = vst [vmem:[%s229 + $0x10] sm:$0xff] %v1080
        %1119 = vst [vmem:[%s229 + $0x18] sm:$0xff] %v1081
        %1120 = vst [vmem:[%s229 + $0x20] sm:$0xff] %v1082
        %1121 = vst [vmem:[%s229 + $0x28] sm:$0xff] %v1083
        %1122 = vst [vmem:[%s229 + $0x30] sm:$0xff] %v1084
        %1123 = vst [vmem:[%s229 + $0x38] sm:$0xff] %v1085
        %1124 = vst [vmem:[%s229 + $0x40] sm:$0xff] %v1086
        %1125 = vst [vmem:[%s229 + $0x48] sm:$0xff] %v1087
        %1126 = vst [vmem:[%s229 + $0x50] sm:$0xff] %v1088
        %1127 = vst [vmem:[%s229 + $0x58] sm:$0xff] %v1089
        %1128 = vst [vmem:[%s229 + $0x60] sm:$0xff] %v1090
        %1129 = vst [vmem:[%s229 + $0x68] sm:$0xff] %v1091
        %1130 = vst [vmem:[%s229 + $0x70] sm:$0xff] %v1092
        %1131 = vst [vmem:[%s229 + $0x78] sm:$0xff] %v1093
        %1132 = vst [vmem:[%s229 + $0x80] sm:$0xff] %v1094
        %1133 = vst [vmem:[%s229 + $0x88] sm:$0xff] %v1095
        %1134 = vst [vmem:[%s229 + $0x90] sm:$0xff] %v1096
        %1135 = vst [vmem:[%s229 + $0x98] sm:$0xff] %v1097
        %1136 = vst [vmem:[%s229 + $0xa0] sm:$0xff] %v1098
        %1137 = vst [vmem:[%s229 + $0xa8] sm:$0xff] %v1099
        %1138 = vst [vmem:[%s229 + $0xb0] sm:$0xff] %v1100
        %1139 = vst [vmem:[%s229 + $0xb8] sm:$0xff] %v1101
        %1140 = vst [vmem:[%s229 + $0xc0] sm:$0xff] %v1102
        %1141 = vst [vmem:[%s229 + $0xc8] sm:$0xff] %v1103
        %1142 = vst [vmem:[%s229 + $0xd0] sm:$0xff] %v1104
        %1143 = vst [vmem:[%s229 + $0xd8] sm:$0xff] %v1105
        %1144 = vst [vmem:[%s229 + $0xe0] sm:$0xff] %v1106
        %1145 = vst [vmem:[%s229 + $0xe8] sm:$0xff] %v1107
        %1146 = vst [vmem:[%s229 + $0xf0] sm:$0xff] %v1108
        %1147 = vst [vmem:[%s229 + $0xf8] sm:$0xff] %v1109
        %1148 = vst [vmem:[%s229 + $0x100] sm:$0xff] %v1110
        %1149 = vst [vmem:[%s229 + $0x108] sm:$0xff] %v1111
        %1150 = vst [vmem:[%s229 + $0x110] sm:$0xff] %v1112
        %1151 = vst [vmem:[%s229 + $0x118] sm:$0xff] %v1113
        %1152 = vst [vmem:[%s229 + $0x120] sm:$0xff] %v1114
        %1153 = vst [vmem:[%s229 + $0x128] sm:$0xf] %v1115
      $region52: #{linear_unit_forward.1} parent=35 // pred_fallthru
        _
      %s1154 = smul.u32 %s19, %s20
      %s1155 = smul.u32 38, %s1154
      %p1156 = scmp.lt.s32.totalorder %s1155, 37
      %s1157 = scalar_select %p1156, %s1155, 37
      %s1158 = smul.addr %s1157, 8
      %s1159 = scalar_lea.vmem %s4, %s1158
      // Predicated region
      $region53: #{linear_unit_forward.1} parent=35 // pred_check
        %p1160 = pneg %p140
      $region54: #{linear_unit_forward.1} parent=35 // pred_check_branch
        %1162 = sbr.rel (%p1160) target = $region56
      $region55: #{linear_unit_forward.1} parent=35 // pred_region
        %s1163 = smul.u32 %s19, %s20
        %s1164 = smul.u32 38, %s1163
      $region56: #{linear_unit_forward.1} parent=35 // pred_fallthru
        _
    $region36: #{linear_unit_forward.1} parent=5 // pred_fallthru
      _
    %p1165 = scmp.le.s32.totalorder 2, %s10
    // Predicated region
    $region57: #{linear_unit_forward.1} parent=5 // pred_check
      %p1166 = pneg %p1165
    $region58: #{linear_unit_forward.1} parent=5 // pred_check_branch
      %1168 = sbr.rel (%p1166) target = $region60
    $region59: #{linear_unit_forward.1} parent=5 // pred_region
      %s1169 = ssub.s32 %s10, 2
      // Predicated region
      $region61: #{linear_unit_forward.1} parent=59 // pred_check
        %p1170 = pneg %p146
      $region62: #{linear_unit_forward.1} parent=59 // pred_check_branch
        %1172 = sbr.rel (%p1170) target = $region64
      $region63: #{linear_unit_forward.1} parent=59 // pred_region
        %s1173 = smul.u32 %s21, %s22
        %s1174 = smul.u32 38, %s1173
        %p1175 = scmp.lt.s32.totalorder %s1174, 37
        %s1176 = scalar_select %p1175, %s1174, 37
        %s1177 = smul.addr %s1176, 8
        %s1178 = scalar_lea.vmem %s4, %s1177
      $region64: #{linear_unit_forward.1} parent=59 // pred_fallthru
        _
    $region60: #{linear_unit_forward.1} parent=5 // pred_fallthru
      _
  $region6: #{linear_unit_forward.1} parent=0 // loop_footer
    %s14 = sadd.s32 1, %s10
  $region7: #{linear_unit_forward.1} parent=0 // loop_footer_branch
    %9 = sbr.rel target = $region3
  $region8: #{linear_unit_forward.1} parent=0 // loop_exit
    _

</llo_original>
